<compile_context>
chip_gen: v5e
topology: v5e:2x2
jax: 0.10.0
libtpu: 0.0.40
codegen_flags: <defaults>
</compile_context>

<pallas_src>
import functools

import jax
import jax.numpy as jnp
from jax.experimental import pallas as pl
from jax.experimental.pallas import tpu as pltpu

HIDDEN = 500
HIDDEN_PAD = 512          # 500 rounded up to a multiple of 128 lanes
LANE = 128
SUBLANE = 8
_VMEM_TILE_BUDGET = 20 * 1024 * 1024   # keep the working set comfortable on all gens


def _round_up(n, m):
    return (n + m - 1) // m * m


def init_params(key, in_features: int, nb_classes: int):
    """PyTorch-convention f32 parameters: W (out_features, in_features), b (out,)."""
    dims = [(in_features, HIDDEN), (HIDDEN, HIDDEN),
            (HIDDEN, HIDDEN), (HIDDEN, nb_classes)]
    params = []
    for i, (fi, fo) in enumerate(dims):
        kw, kb = jax.random.split(jax.random.fold_in(key, i))
        bound = 1.0 / jnp.sqrt(fi)
        W = jax.random.uniform(kw, (fo, fi), jnp.float32, -bound, bound)
        b = jax.random.uniform(kb, (fo,), jnp.float32, -bound, bound)
        params.append((W, b))
    return params


def prepare_params(params, in_features: int, nb_classes: int):
    """One-time packing: transpose W -> (F_in, F_out), zero-pad to lane multiples,
    cast weights to bf16, concatenate biases into a single (4, BW) f32 array and
    stack the two hidden 500x500 weights into one (2, 512, 512) array."""
    f_pad = _round_up(in_features, LANE)
    out_pad = _round_up(nb_classes, LANE)
    bw = max(HIDDEN_PAD, out_pad)

    def pad_t(W, fi_p, fo_p):
        fo, fi = W.shape
        Wt = jnp.zeros((fi_p, fo_p), jnp.float32).at[:fi, :fo].set(W.T)
        return Wt.astype(jnp.bfloat16)

    (W1, b1), (W2, b2), (W3, b3), (W4, b4) = params
    w1 = pad_t(W1, f_pad, HIDDEN_PAD)
    w23 = jnp.stack([pad_t(W2, HIDDEN_PAD, HIDDEN_PAD),
                     pad_t(W3, HIDDEN_PAD, HIDDEN_PAD)])
    w4 = pad_t(W4, HIDDEN_PAD, out_pad)

    ball = jnp.zeros((4, bw), jnp.float32)
    ball = ball.at[0, :HIDDEN].set(b1)
    ball = ball.at[1, :HIDDEN].set(b2)
    ball = ball.at[2, :HIDDEN].set(b3)
    ball = ball.at[3, :b4.shape[0]].set(b4)
    return (w1, w23, w4, ball)


def _make_kernel(out_pad: int, bf16_epilogue: bool):
    def kernel(x_ref, w1_ref, w23_ref, w4_ref, b_ref, o_ref):
        # x_ref: (TM, F_pad) f32; w*: bf16 pre-transposed (F_in_pad, F_out_pad);
        # b_ref: (4, BW) f32.  MXU accumulates f32.
        h = x_ref[...].astype(jnp.bfloat16)

        def hidden_layer(h, w, row):
            acc = jnp.dot(h, w, preferred_element_type=jnp.float32)
            if bf16_epilogue:
                # v6e/v7x: bf16 VPU path; halves live-intermediate width.
                b = b_ref[row:row + 1, :HIDDEN_PAD].astype(jnp.bfloat16)
                return jnp.maximum(acc.astype(jnp.bfloat16) + b, 0)
            # v5e (no bf16 VALU): keep elementwise math in f32.
            b = b_ref[row:row + 1, :HIDDEN_PAD]
            return jnp.maximum(acc + b, 0.0).astype(jnp.bfloat16)

        # dense_1 / dense_2 / dense_3: Dropout(id) -> Linear -> ReLU
        h = hidden_layer(h, w1_ref[...], 0)
        h = hidden_layer(h, w23_ref[0], 1)
        h = hidden_layer(h, w23_ref[1], 2)
        # drop_1: identity in eval mode
        # dense_4 (no ReLU)
        y = jnp.dot(h, w4_ref[...], preferred_element_type=jnp.float32)
        y = y + b_ref[3:4, :out_pad]
        o_ref[...] = y.astype(o_ref.dtype)

    return kernel


@functools.partial(jax.jit, static_argnums=(2,))
def classifier_mlp_forward(x, prepped, nb_classes: int):
    B = x.shape[0]
    h = x.reshape(B, -1)                   # == torch x.reshape(B, -1)
    F = h.shape[1]

    w1, w23, w4, ball = prepped
    F_pad = w1.shape[0]
    out_pad = w4.shape[1]
    assert F_pad == _round_up(F, LANE), (F, F_pad)

    # No padded-copy pre-pass in the aligned case: pass f32 activations directly
    # (cast to bf16 inside the kernel).  Pad only when shapes require it.
    B8 = _round_up(B, SUBLANE)
    h = h.astype(jnp.float32)
    if (B8 != B) or (F_pad != F):
        h = jnp.pad(h, ((0, B8 - B), (0, F_pad - F)))

    w_bytes = sum(int(a.size) * a.dtype.itemsize for a in (w1, w23, w4, ball))

    # Batch tile: big enough to amortize per-grid-step overhead, grid >= 2 when
    # possible (v7x megacore), capped by a VMEM working-set estimate.
    if B8 <= SUBLANE:
        TM = SUBLANE
    else:
        TM = min(512, _round_up((B8 + 1) // 2, SUBLANE))

    def vmem_need(tm):
        return (2 * tm * F_pad * 4            # double-buffered f32 x tile
                + 2 * tm * out_pad * 4        # double-buffered f32 out tile
                + 4 * tm * HIDDEN_PAD * 4     # live/spilled intermediates (generous)
                + 2 * w_bytes)                # replicated weights (double-buffered)

    while TM > SUBLANE and vmem_need(TM) > _VMEM_TILE_BUDGET:
        TM = max(SUBLANE, _round_up(TM // 2, SUBLANE))

    grid = (pl.cdiv(B8, TM),)

    # bf16 elementwise epilogue only on chips with a bf16 VPU path (v6e/v7x).
    bf16_epilogue = False
    try:
        kind = jax.devices()[0].device_kind.lower()
        bf16_epilogue = ("v6" in kind) or ("v7" in kind) or ("7x" in kind)
    except Exception:
        pass

    kernel = _make_kernel(out_pad, bf16_epilogue)

    flops = 2 * B8 * (F_pad * HIDDEN_PAD
                      + 2 * HIDDEN_PAD * HIDDEN_PAD
                      + HIDDEN_PAD * out_pad)
    bytes_accessed = B8 * F_pad * 4 + w_bytes + B8 * out_pad * 4

    out = pl.pallas_call(
        kernel,
        out_shape=jax.ShapeDtypeStruct((B8, out_pad), jnp.float32),
        grid=grid,
        in_specs=[
            pl.BlockSpec((TM, F_pad), lambda i: (i, 0)),
            pl.BlockSpec(w1.shape, lambda i: (0, 0)),       # replicated, DMA'd once
            pl.BlockSpec(w23.shape, lambda i: (0, 0, 0)),
            pl.BlockSpec(w4.shape, lambda i: (0, 0)),
            pl.BlockSpec(ball.shape, lambda i: (0, 0)),
        ],
        out_specs=pl.BlockSpec((TM, out_pad), lambda i: (i, 0)),
        compiler_params=pltpu.CompilerParams(
            dimension_semantics=("parallel",),
            vmem_limit_bytes=int(min(48 * 1024 * 1024,
                                     max(32 * 1024 * 1024, 2 * vmem_need(TM)))),
        ),
        cost_estimate=pl.CostEstimate(
            flops=flops, transcendentals=0, bytes_accessed=bytes_accessed),
    )(h, w1, w23, w4, ball)

    return out[:B, :nb_classes]


def _reference_forward(x, params):
    """Plain-JAX f32 reference matching the PyTorch module in eval mode."""
    B = x.shape[0]
    h = x.reshape(B, -1).astype(jnp.float32)
    for i, (W, b) in enumerate(params):
        h = h @ W.T + b
        if i < 3:
            h = jnp.maximum(h, 0.0)
    return h


if __name__ == "__main__":
    key = jax.random.PRNGKey(0)
    k_x, k_p = jax.random.split(key)

    # Small input: (B, T, C) flattens to F = 8*16 = 128 == input_shape[-1].
    B, T, C = 2, 8, 16
    nb_classes = 10
    x = jax.random.normal(k_x, (B, T, C), dtype=jnp.float32)

    params = init_params(k_p, in_features=T * C, nb_classes=nb_classes)
    prepped = prepare_params(params, in_features=T * C, nb_classes=nb_classes)

    out = classifier_mlp_forward(x, prepped, nb_classes)
    out = jax.block_until_ready(out)
    assert out.shape == (B, nb_classes), out.shape

    # Correctness check vs f32 reference (weights/activations are bf16 in the
    # kernel, accumulation is f32 -> loose tolerance).
    ref = _reference_forward(x, params)
    assert jnp.allclose(out, ref, rtol=1e-1, atol=1.5e-1), float(
        jnp.max(jnp.abs(out - ref)))

    print("KERNEL_OK")
</pallas_src>

<mosaic_0001>
module attributes {stable_mosaic.version = 11 : i64} {
  func.func @kernel(%arg0: i32, %arg1: memref<8x128xf32, #tpu.memory_space<vmem>>, %arg2: memref<128x512xbf16, #tpu.memory_space<vmem>>, %arg3: memref<2x512x512xbf16, #tpu.memory_space<vmem>>, %arg4: memref<512x128xbf16, #tpu.memory_space<vmem>>, %arg5: memref<4x512xf32, #tpu.memory_space<vmem>>, %arg6: memref<8x128xf32, #tpu.memory_space<vmem>>) attributes {dimension_semantics = [#tpu.dimension_semantics<parallel>], iteration_bounds = array<i64: 1>, scalar_prefetch = 0 : i64, scratch_operands = 0 : i64, tpu.core_type = #tpu.core_type<tc>, window_params = [{transform_indices = @transform_0, window_bounds = array<i64: 8, 128>}, {pipeline_mode = #tpu.pipeline_mode<synchronous>, transform_indices = @transform_1, window_bounds = array<i64: 128, 512>}, {pipeline_mode = #tpu.pipeline_mode<synchronous>, transform_indices = @transform_2, window_bounds = array<i64: 2, 512, 512>}, {pipeline_mode = #tpu.pipeline_mode<synchronous>, transform_indices = @transform_3, window_bounds = array<i64: 512, 128>}, {pipeline_mode = #tpu.pipeline_mode<synchronous>, transform_indices = @transform_4, window_bounds = array<i64: 4, 512>}, {transform_indices = @transform_5, window_bounds = array<i64: 8, 128>}]} {
    %c0 = arith.constant 0 : index
    %c0_0 = arith.constant 0 : index
    %0 = vector.load %arg1[%c0, %c0_0] : memref<8x128xf32, #tpu.memory_space<vmem>>, vector<8x128xf32>
    %1 = arith.truncf %0 : vector<8x128xf32> to vector<8x128xbf16>
    %c0_1 = arith.constant 0 : index
    %c0_2 = arith.constant 0 : index
    %2 = vector.load %arg2[%c0_1, %c0_2] : memref<128x512xbf16, #tpu.memory_space<vmem>>, vector<128x512xbf16>
    %cst = arith.constant dense<0.000000e+00> : vector<8x512xf32>
    %3 = tpu.matmul %1, %2, %cst {dimension_numbers = #tpu.dot_dimension_numbers<[1], [0], [0], [1], [0, 0, 1, 1], [], []>} : vector<8x128xbf16>, vector<128x512xbf16>, vector<8x512xf32> -> vector<8x512xf32>
    %c0_3 = arith.constant 0 : index
    %c0_4 = arith.constant 0 : index
    %4 = vector.load %arg5[%c0_3, %c0_4] : memref<4x512xf32, #tpu.memory_space<vmem>>, vector<1x512xf32>
    %5 = vector.broadcast %4 : vector<1x512xf32> to vector<8x512xf32>
    %6 = arith.addf %3, %5 : vector<8x512xf32>
    %cst_5 = arith.constant 0.000000e+00 : f32
    %7 = vector.broadcast %cst_5 : f32 to vector<8x512xf32>
    %8 = arith.maximumf %6, %7 : vector<8x512xf32>
    %9 = arith.truncf %8 : vector<8x512xf32> to vector<8x512xbf16>
    %c0_6 = arith.constant 0 : index
    %c0_7 = arith.constant 0 : index
    %c0_8 = arith.constant 0 : index
    %10 = vector.load %arg3[%c0_6, %c0_7, %c0_8] : memref<2x512x512xbf16, #tpu.memory_space<vmem>>, vector<1x512x512xbf16>
    %11 = vector.shape_cast %10 : vector<1x512x512xbf16> to vector<512x512xbf16>
    %cst_9 = arith.constant dense<0.000000e+00> : vector<8x512xf32>
    %12 = tpu.matmul %9, %11, %cst_9 {dimension_numbers = #tpu.dot_dimension_numbers<[1], [0], [0], [1], [0, 0, 1, 1], [], []>} : vector<8x512xbf16>, vector<512x512xbf16>, vector<8x512xf32> -> vector<8x512xf32>
    %c1 = arith.constant 1 : index
    %c0_10 = arith.constant 0 : index
    %13 = vector.load %arg5[%c1, %c0_10] : memref<4x512xf32, #tpu.memory_space<vmem>>, vector<1x512xf32>
    %14 = vector.broadcast %13 : vector<1x512xf32> to vector<8x512xf32>
    %15 = arith.addf %12, %14 : vector<8x512xf32>
    %cst_11 = arith.constant 0.000000e+00 : f32
    %16 = vector.broadcast %cst_11 : f32 to vector<8x512xf32>
    %17 = arith.maximumf %15, %16 : vector<8x512xf32>
    %18 = arith.truncf %17 : vector<8x512xf32> to vector<8x512xbf16>
    %c1_12 = arith.constant 1 : index
    %c0_13 = arith.constant 0 : index
    %c0_14 = arith.constant 0 : index
    %19 = vector.load %arg3[%c1_12, %c0_13, %c0_14] : memref<2x512x512xbf16, #tpu.memory_space<vmem>>, vector<1x512x512xbf16>
    %20 = vector.shape_cast %19 : vector<1x512x512xbf16> to vector<512x512xbf16>
    %cst_15 = arith.constant dense<0.000000e+00> : vector<8x512xf32>
    %21 = tpu.matmul %18, %20, %cst_15 {dimension_numbers = #tpu.dot_dimension_numbers<[1], [0], [0], [1], [0, 0, 1, 1], [], []>} : vector<8x512xbf16>, vector<512x512xbf16>, vector<8x512xf32> -> vector<8x512xf32>
    %c2 = arith.constant 2 : index
    %c0_16 = arith.constant 0 : index
    %22 = vector.load %arg5[%c2, %c0_16] : memref<4x512xf32, #tpu.memory_space<vmem>>, vector<1x512xf32>
    %23 = vector.broadcast %22 : vector<1x512xf32> to vector<8x512xf32>
    %24 = arith.addf %21, %23 : vector<8x512xf32>
    %cst_17 = arith.constant 0.000000e+00 : f32
    %25 = vector.broadcast %cst_17 : f32 to vector<8x512xf32>
    %26 = arith.maximumf %24, %25 : vector<8x512xf32>
    %27 = arith.truncf %26 : vector<8x512xf32> to vector<8x512xbf16>
    %c0_18 = arith.constant 0 : index
    %c0_19 = arith.constant 0 : index
    %28 = vector.load %arg4[%c0_18, %c0_19] : memref<512x128xbf16, #tpu.memory_space<vmem>>, vector<512x128xbf16>
    %cst_20 = arith.constant dense<0.000000e+00> : vector<8x128xf32>
    %29 = tpu.matmul %27, %28, %cst_20 {dimension_numbers = #tpu.dot_dimension_numbers<[1], [0], [0], [1], [0, 0, 1, 1], [], []>} : vector<8x512xbf16>, vector<512x128xbf16>, vector<8x128xf32> -> vector<8x128xf32>
    %c3 = arith.constant 3 : index
    %c0_21 = arith.constant 0 : index
    %30 = vector.load %arg5[%c3, %c0_21] : memref<4x512xf32, #tpu.memory_space<vmem>>, vector<1x128xf32>
    %31 = vector.broadcast %30 : vector<1x128xf32> to vector<8x128xf32>
    %32 = arith.addf %29, %31 : vector<8x128xf32>
    %c0_22 = arith.constant 0 : index
    %c0_23 = arith.constant 0 : index
    %33 = vector.load %arg6[%c0_22, %c0_23] : memref<8x128xf32, #tpu.memory_space<vmem>>, vector<8x128xf32>
    tpu.vector_store %arg6[%c0_22, %c0_23], %32 {strides = array<i32>} : memref<8x128xf32, #tpu.memory_space<vmem>>, vector<8x128xf32>,
    return
  }
  func.func @transform_0(%arg0: i32) -> (i32, i32) {
    %c0_i32 = arith.constant 0 : i32
    %c0_i32_0 = arith.constant 0 : i32
    return %arg0, %c0_i32 : i32, i32
  }
  func.func @transform_1(%arg0: i32) -> (i32, i32) {
    %c0_i32 = arith.constant 0 : i32
    %c0_i32_0 = arith.constant 0 : i32
    %c0_i32_1 = arith.constant 0 : i32
    return %c0_i32, %c0_i32_0 : i32, i32
  }
  func.func @transform_2(%arg0: i32) -> (i32, i32, i32) {
    %c0_i32 = arith.constant 0 : i32
    %c0_i32_0 = arith.constant 0 : i32
    %c0_i32_1 = arith.constant 0 : i32
    %c0_i32_2 = arith.constant 0 : i32
    return %c0_i32, %c0_i32_0, %c0_i32_1 : i32, i32, i32
  }
  func.func @transform_3(%arg0: i32) -> (i32, i32) {
    %c0_i32 = arith.constant 0 : i32
    %c0_i32_0 = arith.constant 0 : i32
    %c0_i32_1 = arith.constant 0 : i32
    return %c0_i32, %c0_i32_0 : i32, i32
  }
  func.func @transform_4(%arg0: i32) -> (i32, i32) {
    %c0_i32 = arith.constant 0 : i32
    %c0_i32_0 = arith.constant 0 : i32
    %c0_i32_1 = arith.constant 0 : i32
    return %c0_i32, %c0_i32_0 : i32, i32
  }
  func.func @transform_5(%arg0: i32) -> (i32, i32) {
    %c0_i32 = arith.constant 0 : i32
    %c0_i32_0 = arith.constant 0 : i32
    return %arg0, %c0_i32 : i32, i32
  }
}

</mosaic_0001>

<llo_original>
// kernel: classifier_mlp_forward.1
$region0: #{classifier_mlp_forward.1}
  #allocation0 [shape = 'u32[]', space=smem, size = 0x4, offset = 0x4, fixed_abs, tag = 'smem constant byte address 0x4 - core index']
  #allocation1 [shape = 'u32[72,128]{1,0:T(1,128)}', space=vmem, size = 0x9000, scoped, tag = 'internal scratch']
  %s0 = inlined_call_operand.vmem [shape: f32[8,128], index: 0, kind: input, shape index: {}]
  %s1 = inlined_call_operand.hbm [shape: bf16[128,512], index: 1, kind: input, shape index: {}]
  %s2 = inlined_call_operand.hbm [shape: bf16[2,512,512], index: 2, kind: input, shape index: {}]
  %s3 = inlined_call_operand.hbm [shape: bf16[512,128], index: 3, kind: input, shape index: {}]
  %s4 = inlined_call_operand.vmem [shape: f32[4,512], index: 4, kind: input, shape index: {}]
  %s5 = inlined_call_operand.vmem [shape: f32[8,128], index: 5, kind: output, shape index: {}]
  %s6 = sld [smem:[#allocation0]]
  $region42: #{classifier_mlp_forward.1} parent=0
    _
  %s8 = ssub.s32 1, %s6
  %s9 = scalar_select 0, %s8, %s6
  $region1: #{classifier_mlp_forward.1} parent=0
    #allocation2 [shape = 'u8[131072]{0}', space=vmem, size = 0x20000, scoped, tag = 'input window, operand 1, single buffered']
    #allocation3 [shape = 's32[1]{0}', space=sflag, size = 0x4, scoped, tag = 'scoped memory for classifier_mlp_forward.1']
    #allocation4 [shape = 'u8[1048576]{0}', space=vmem, size = 0x100000, scoped, tag = 'input window, operand 2, single buffered']
    #allocation5 [shape = 's32[1]{0}', space=sflag, size = 0x4, scoped, tag = 'scoped memory for classifier_mlp_forward.1']
    #allocation6 [shape = 'u8[131072]{0}', space=vmem, size = 0x20000, scoped, tag = 'input window, operand 3, single buffered']
    %10 = vsyncpa [#allocation3], 0
    %11 = vsyncpa [#allocation5], 0
    // Predicated region
    $region2: #{classifier_mlp_forward.1} parent=1 // pred_check
      _
    $region3: #{classifier_mlp_forward.1} parent=1 // pred_check_branch
      %13 = sbr.rel (0) target = $region5
    $region4: #{classifier_mlp_forward.1} parent=1 // pred_region
      _
    $region5: #{classifier_mlp_forward.1} parent=1 // pred_fallthru
      _
    // Predicated region
    $region6: #{classifier_mlp_forward.1} parent=1 // pred_check
      _
    $region7: #{classifier_mlp_forward.1} parent=1 // pred_check_branch
      %15 = sbr.rel (0) target = $region9
    $region8: #{classifier_mlp_forward.1} parent=1 // pred_region
      %17 = vsyncadd [#allocation3], 0
      %s18 = sshll.u32 %s1, 4
      %s19 = int_to_ptr.hbm [resolvable:$true] %s18
      %s20 = sshll.u32 [#allocation2], 4
      %s21 = int_to_ptr.vmem [resolvable:$true] %s20
      %26 = dma.hbm_to_vmem [thread:$0]  %s19, 4096, %s21, [#allocation3], 256, 256, 16
    $region9: #{classifier_mlp_forward.1} parent=1 // pred_fallthru
      _
    // Predicated region
    $region10: #{classifier_mlp_forward.1} parent=1 // pred_check
      _
    $region11: #{classifier_mlp_forward.1} parent=1 // pred_check_branch
      %28 = sbr.rel (0) target = $region13
    $region12: #{classifier_mlp_forward.1} parent=1 // pred_region
      %30 = vsyncadd [#allocation5], 0
      %s31 = sshll.u32 %s2, 4
      %s32 = int_to_ptr.hbm [resolvable:$true] %s31
      %s33 = sshll.u32 [#allocation4], 4
      %s34 = int_to_ptr.vmem [resolvable:$true] %s33
      %39 = dma.hbm_to_vmem [thread:$0]  %s32, 32768, %s34, [#allocation5], 256, 256, 16
    $region13: #{classifier_mlp_forward.1} parent=1 // pred_fallthru
      _
    // Predicated region
    $region14: #{classifier_mlp_forward.1} parent=1 // pred_check
      _
    $region15: #{classifier_mlp_forward.1} parent=1 // pred_check_branch
      %41 = sbr.rel (0) target = $region17
    $region16: #{classifier_mlp_forward.1} parent=1 // pred_region
      %43 = vsyncadd [#allocation5], 0
      %s44 = sshll.u32 %s3, 4
      %s45 = int_to_ptr.hbm [resolvable:$true] %s44
      %s46 = sshll.u32 [#allocation6], 4
      %s47 = int_to_ptr.vmem [resolvable:$true] %s46
      %52 = dma.hbm_to_vmem [thread:$0]  %s45, 4096, %s47, [#allocation5], 64, 64, 4
    $region17: #{classifier_mlp_forward.1} parent=1 // pred_fallthru
      _
    // Predicated region
    $region18: #{classifier_mlp_forward.1} parent=1 // pred_check
      _
    $region19: #{classifier_mlp_forward.1} parent=1 // pred_check_branch
      %54 = sbr.rel (0) target = $region21
    $region20: #{classifier_mlp_forward.1} parent=1 // pred_region
      _
    $region21: #{classifier_mlp_forward.1} parent=1 // pred_fallthru
      _
    // Predicated region
    $region22: #{classifier_mlp_forward.1} parent=1 // pred_check
      _
    $region23: #{classifier_mlp_forward.1} parent=1 // pred_check_branch
      %56 = sbr.rel (0) target = $region25
    $region24: #{classifier_mlp_forward.1} parent=1 // pred_region
      %58 = dma.done [#allocation3], 4096
    $region25: #{classifier_mlp_forward.1} parent=1 // pred_fallthru
      _
    // Predicated region
    $region26: #{classifier_mlp_forward.1} parent=1 // pred_check
      _
    $region27: #{classifier_mlp_forward.1} parent=1 // pred_check_branch
      %60 = sbr.rel (0) target = $region29
    $region28: #{classifier_mlp_forward.1} parent=1 // pred_region
      %62 = dma.done [#allocation5], 32768
    $region29: #{classifier_mlp_forward.1} parent=1 // pred_fallthru
      _
    // Predicated region
    $region30: #{classifier_mlp_forward.1} parent=1 // pred_check
      _
    $region31: #{classifier_mlp_forward.1} parent=1 // pred_check_branch
      %64 = sbr.rel (0) target = $region33
    $region32: #{classifier_mlp_forward.1} parent=1 // pred_region
      %66 = dma.done [#allocation5], 4096
    $region33: #{classifier_mlp_forward.1} parent=1 // pred_fallthru
      _
    %v67 = vld [vmem:[%s0] sm:$0xff]
    %v68 = vpack.c.bf16 %v67, %v67
    %v69 = vld [vmem:[#allocation2] sm:$0xff]
    %v70 = vld [vmem:[#allocation2 + $0x8] sm:$0xff]
    %v71 = vld [vmem:[#allocation2 + $0x10] sm:$0xff]
    %v72 = vld [vmem:[#allocation2 + $0x18] sm:$0xff]
    %v73 = vld [vmem:[#allocation2 + $0x20] sm:$0xff]
    %v74 = vld [vmem:[#allocation2 + $0x28] sm:$0xff]
    %v75 = vld [vmem:[#allocation2 + $0x30] sm:$0xff]
    %v76 = vld [vmem:[#allocation2 + $0x38] sm:$0xff]
    %v77 = vld [vmem:[#allocation2 + $0x40] sm:$0xff]
    %v78 = vld [vmem:[#allocation2 + $0x48] sm:$0xff]
    %v79 = vld [vmem:[#allocation2 + $0x50] sm:$0xff]
    %v80 = vld [vmem:[#allocation2 + $0x58] sm:$0xff]
    %v81 = vld [vmem:[#allocation2 + $0x60] sm:$0xff]
    %v82 = vld [vmem:[#allocation2 + $0x68] sm:$0xff]
    %v83 = vld [vmem:[#allocation2 + $0x70] sm:$0xff]
    %v84 = vld [vmem:[#allocation2 + $0x78] sm:$0xff]
    %v85 = vld [vmem:[#allocation2 + $0x80] sm:$0xff]
    %v86 = vld [vmem:[#allocation2 + $0x88] sm:$0xff]
    %v87 = vld [vmem:[#allocation2 + $0x90] sm:$0xff]
    %v88 = vld [vmem:[#allocation2 + $0x98] sm:$0xff]
    %v89 = vld [vmem:[#allocation2 + $0xa0] sm:$0xff]
    %v90 = vld [vmem:[#allocation2 + $0xa8] sm:$0xff]
    %v91 = vld [vmem:[#allocation2 + $0xb0] sm:$0xff]
    %v92 = vld [vmem:[#allocation2 + $0xb8] sm:$0xff]
    %v93 = vld [vmem:[#allocation2 + $0xc0] sm:$0xff]
    %v94 = vld [vmem:[#allocation2 + $0xc8] sm:$0xff]
    %v95 = vld [vmem:[#allocation2 + $0xd0] sm:$0xff]
    %v96 = vld [vmem:[#allocation2 + $0xd8] sm:$0xff]
    %v97 = vld [vmem:[#allocation2 + $0xe0] sm:$0xff]
    %v98 = vld [vmem:[#allocation2 + $0xe8] sm:$0xff]
    %v99 = vld [vmem:[#allocation2 + $0xf0] sm:$0xff]
    %v100 = vld [vmem:[#allocation2 + $0xf8] sm:$0xff]
    %v101 = vld [vmem:[%s4] ss:$4 sm:$0xf]
    %v103 = vperm.slane %v101, 0
    %v104 = vperm.slane %v101, 1
    %v105 = vperm.slane %v101, 2
    %v106 = vperm.slane %v101, 3
    %v143 = vunpack.c.l.b16 %v69
    %v144 = vunpack.c.h.b16 %v69
    %v145 = vunpack.c.l.b16 %v70
    %v146 = vunpack.c.h.b16 %v70
    %v147 = vunpack.c.l.b16 %v71
    %v148 = vunpack.c.h.b16 %v71
    %v149 = vunpack.c.l.b16 %v72
    %v150 = vunpack.c.h.b16 %v72
    %v151 = vunpack.c.l.b16 %v73
    %v152 = vunpack.c.h.b16 %v73
    %v153 = vunpack.c.l.b16 %v74
    %v154 = vunpack.c.h.b16 %v74
    %v155 = vunpack.c.l.b16 %v75
    %v156 = vunpack.c.h.b16 %v75
    %v157 = vunpack.c.l.b16 %v76
    %v158 = vunpack.c.h.b16 %v76
    %v159 = vunpack.c.l.b16 %v77
    %v160 = vunpack.c.h.b16 %v77
    %v161 = vunpack.c.l.b16 %v78
    %v162 = vunpack.c.h.b16 %v78
    %v163 = vunpack.c.l.b16 %v79
    %v164 = vunpack.c.h.b16 %v79
    %v165 = vunpack.c.l.b16 %v80
    %v166 = vunpack.c.h.b16 %v80
    %v167 = vunpack.c.l.b16 %v81
    %v168 = vunpack.c.h.b16 %v81
    %v169 = vunpack.c.l.b16 %v82
    %v170 = vunpack.c.h.b16 %v82
    %v171 = vunpack.c.l.b16 %v83
    %v172 = vunpack.c.h.b16 %v83
    %v173 = vunpack.c.l.b16 %v84
    %v174 = vunpack.c.h.b16 %v84
    %v175 = vunpack.c.l.b16 %v85
    %v176 = vunpack.c.h.b16 %v85
    %v177 = vunpack.c.l.b16 %v86
    %v178 = vunpack.c.h.b16 %v86
    %v179 = vunpack.c.l.b16 %v87
    %v180 = vunpack.c.h.b16 %v87
    %v181 = vunpack.c.l.b16 %v88
    %v182 = vunpack.c.h.b16 %v88
    %v183 = vunpack.c.l.b16 %v89
    %v184 = vunpack.c.h.b16 %v89
    %v185 = vunpack.c.l.b16 %v90
    %v186 = vunpack.c.h.b16 %v90
    %v187 = vunpack.c.l.b16 %v91
    %v188 = vunpack.c.h.b16 %v91
    %v189 = vunpack.c.l.b16 %v92
    %v190 = vunpack.c.h.b16 %v92
    %v191 = vunpack.c.l.b16 %v93
    %v192 = vunpack.c.h.b16 %v93
    %v193 = vunpack.c.l.b16 %v94
    %v194 = vunpack.c.h.b16 %v94
    %v195 = vunpack.c.l.b16 %v95
    %v196 = vunpack.c.h.b16 %v95
    %v197 = vunpack.c.l.b16 %v96
    %v198 = vunpack.c.h.b16 %v96
    %v199 = vunpack.c.l.b16 %v97
    %v200 = vunpack.c.h.b16 %v97
    %v201 = vunpack.c.l.b16 %v98
    %v202 = vunpack.c.h.b16 %v98
    %v203 = vunpack.c.l.b16 %v99
    %v204 = vunpack.c.h.b16 %v99
    %v205 = vunpack.c.l.b16 %v100
    %v206 = vunpack.c.h.b16 %v100
    %v207 = vpack.c.b16 %v147, %v143
    %v208 = vpack.c.b16 %v148, %v144
    %v209 = vpack.c.b16 %v149, %v145
    %v210 = vpack.c.b16 %v150, %v146
    %v211 = vpack.c.b16 %v155, %v151
    %v212 = vpack.c.b16 %v156, %v152
    %v213 = vpack.c.b16 %v157, %v153
    %v214 = vpack.c.b16 %v158, %v154
    %v215 = vpack.c.b16 %v163, %v159
    %v216 = vpack.c.b16 %v164, %v160
    %v217 = vpack.c.b16 %v165, %v161
    %v218 = vpack.c.b16 %v166, %v162
    %v219 = vpack.c.b16 %v171, %v167
    %v220 = vpack.c.b16 %v172, %v168
    %v221 = vpack.c.b16 %v173, %v169
    %v222 = vpack.c.b16 %v174, %v170
    %v223 = vpack.c.b16 %v179, %v175
    %v224 = vpack.c.b16 %v180, %v176
    %v225 = vpack.c.b16 %v181, %v177
    %v226 = vpack.c.b16 %v182, %v178
    %v227 = vpack.c.b16 %v187, %v183
    %v228 = vpack.c.b16 %v188, %v184
    %v229 = vpack.c.b16 %v189, %v185
    %v230 = vpack.c.b16 %v190, %v186
    %v231 = vpack.c.b16 %v195, %v191
    %v232 = vpack.c.b16 %v196, %v192
    %v233 = vpack.c.b16 %v197, %v193
    %v234 = vpack.c.b16 %v198, %v194
    %v235 = vpack.c.b16 %v203, %v199
    %v236 = vpack.c.b16 %v204, %v200
    %v237 = vpack.c.b16 %v205, %v201
    %v238 = vpack.c.b16 %v206, %v202
    %271 = vmatpush.bf16.msra.mxu0 %v235
    %272 = vmatpush.bf16.msra.mxu0 %v231
    %273 = vmatpush.bf16.msra.mxu0 %v227
    %274 = vmatpush.bf16.msra.mxu0 %v223
    %275 = vmatpush.bf16.msra.mxu0 %v219
    %276 = vmatpush.bf16.msra.mxu0 %v215
    %277 = vmatpush.bf16.msra.mxu0 %v211
    %278 = vmatpush.bf16.msra.mxu0 %v207
    %279 = vmatmul.bf16.gmra.mxu0 %v68
    %v280 = vpop.f32.mrf.mxu0
    %v281 = vadd.f32 %v103, %v280
    %v282 = vpop.f32.mrf.mxu0
    %283 = vdwg.mxu0
    %284 = vmatpush.bf16.msra.mxu0 %v236
    %285 = vmatpush.bf16.msra.mxu0 %v232
    %286 = vmatpush.bf16.msra.mxu0 %v228
    %287 = vmatpush.bf16.msra.mxu0 %v224
    %288 = vmatpush.bf16.msra.mxu0 %v220
    %289 = vmatpush.bf16.msra.mxu0 %v216
    %290 = vmatpush.bf16.msra.mxu0 %v212
    %291 = vmatpush.bf16.msra.mxu0 %v208
    %292 = vmatmul.bf16.gmra.mxu0 %v68
    %v293 = vpop.f32.mrf.mxu0
    %v294 = vadd.f32 %v104, %v293
    %v295 = vpop.f32.mrf.mxu0
    %296 = vdwg.mxu0
    %297 = vmatpush.bf16.msra.mxu0 %v237
    %298 = vmatpush.bf16.msra.mxu0 %v233
    %299 = vmatpush.bf16.msra.mxu0 %v229
    %300 = vmatpush.bf16.msra.mxu0 %v225
    %301 = vmatpush.bf16.msra.mxu0 %v221
    %302 = vmatpush.bf16.msra.mxu0 %v217
    %303 = vmatpush.bf16.msra.mxu0 %v213
    %304 = vmatpush.bf16.msra.mxu0 %v209
    %305 = vmatmul.bf16.gmra.mxu0 %v68
    %v306 = vpop.f32.mrf.mxu0
    %v307 = vadd.f32 %v105, %v306
    %v308 = vpop.f32.mrf.mxu0
    %309 = vdwg.mxu0
    %310 = vmatpush.bf16.msra.mxu0 %v238
    %311 = vmatpush.bf16.msra.mxu0 %v234
    %312 = vmatpush.bf16.msra.mxu0 %v230
    %313 = vmatpush.bf16.msra.mxu0 %v226
    %314 = vmatpush.bf16.msra.mxu0 %v222
    %315 = vmatpush.bf16.msra.mxu0 %v218
    %316 = vmatpush.bf16.msra.mxu0 %v214
    %317 = vmatpush.bf16.msra.mxu0 %v210
    %318 = vmatmul.bf16.gmra.mxu0 %v68
    %v319 = vpop.f32.mrf.mxu0
    %v320 = vadd.f32 %v106, %v319
    %v321 = vpop.f32.mrf.mxu0
    %322 = vdwg.mxu0
    %v323 = vmax.f32 %v281, 0.0
    %v324 = vmax.f32 %v294, 0.0
    %v325 = vmax.f32 %v307, 0.0
    %v326 = vmax.f32 %v320, 0.0
    %v327 = vpack.c.bf16 %v323, %v323
    %v328 = vpack.c.bf16 %v324, %v324
    %v329 = vpack.c.bf16 %v325, %v325
    %v330 = vpack.c.bf16 %v326, %v326
    %v331 = vld [vmem:[#allocation4] sm:$0xff]
    %v332 = vld [vmem:[#allocation4 + $0x8] sm:$0xff]
    %v333 = vld [vmem:[#allocation4 + $0x10] sm:$0xff]
    %v334 = vld [vmem:[#allocation4 + $0x18] sm:$0xff]
    %v335 = vld [vmem:[#allocation4 + $0x20] sm:$0xff]
    %v336 = vld [vmem:[#allocation4 + $0x28] sm:$0xff]
    %v337 = vld [vmem:[#allocation4 + $0x30] sm:$0xff]
    %v338 = vld [vmem:[#allocation4 + $0x38] sm:$0xff]
    %v339 = vld [vmem:[#allocation4 + $0x40] sm:$0xff]
    %v340 = vld [vmem:[#allocation4 + $0x48] sm:$0xff]
    %v341 = vld [vmem:[#allocation4 + $0x50] sm:$0xff]
    %v342 = vld [vmem:[#allocation4 + $0x58] sm:$0xff]
    %v343 = vld [vmem:[#allocation4 + $0x60] sm:$0xff]
    %v344 = vld [vmem:[#allocation4 + $0x68] sm:$0xff]
    %v345 = vld [vmem:[#allocation4 + $0x70] sm:$0xff]
    %v346 = vld [vmem:[#allocation4 + $0x78] sm:$0xff]
    %v347 = vld [vmem:[#allocation4 + $0x80] sm:$0xff]
    %v348 = vld [vmem:[#allocation4 + $0x88] sm:$0xff]
    %v349 = vld [vmem:[#allocation4 + $0x90] sm:$0xff]
    %v350 = vld [vmem:[#allocation4 + $0x98] sm:$0xff]
    %v351 = vld [vmem:[#allocation4 + $0xa0] sm:$0xff]
    %v352 = vld [vmem:[#allocation4 + $0xa8] sm:$0xff]
    %v353 = vld [vmem:[#allocation4 + $0xb0] sm:$0xff]
    %v354 = vld [vmem:[#allocation4 + $0xb8] sm:$0xff]
    %v355 = vld [vmem:[#allocation4 + $0xc0] sm:$0xff]
    %v356 = vld [vmem:[#allocation4 + $0xc8] sm:$0xff]
    %v357 = vld [vmem:[#allocation4 + $0xd0] sm:$0xff]
    %v358 = vld [vmem:[#allocation4 + $0xd8] sm:$0xff]
    %v359 = vld [vmem:[#allocation4 + $0xe0] sm:$0xff]
    %v360 = vld [vmem:[#allocation4 + $0xe8] sm:$0xff]
    %v361 = vld [vmem:[#allocation4 + $0xf0] sm:$0xff]
    %v362 = vld [vmem:[#allocation4 + $0xf8] sm:$0xff]
    %v363 = vld [vmem:[#allocation4 + $0x100] sm:$0xff]
    %v364 = vld [vmem:[#allocation4 + $0x108] sm:$0xff]
    %v365 = vld [vmem:[#allocation4 + $0x110] sm:$0xff]
    %v366 = vld [vmem:[#allocation4 + $0x118] sm:$0xff]
    %v367 = vld [vmem:[#allocation4 + $0x120] sm:$0xff]
    %v368 = vld [vmem:[#allocation4 + $0x128] sm:$0xff]
    %v369 = vld [vmem:[#allocation4 + $0x130] sm:$0xff]
    %v370 = vld [vmem:[#allocation4 + $0x138] sm:$0xff]
    %v371 = vld [vmem:[#allocation4 + $0x140] sm:$0xff]
    %v372 = vld [vmem:[#allocation4 + $0x148] sm:$0xff]
    %v373 = vld [vmem:[#allocation4 + $0x150] sm:$0xff]
    %v374 = vld [vmem:[#allocation4 + $0x158] sm:$0xff]
    %v375 = vld [vmem:[#allocation4 + $0x160] sm:$0xff]
    %v376 = vld [vmem:[#allocation4 + $0x168] sm:$0xff]
    %v377 = vld [vmem:[#allocation4 + $0x170] sm:$0xff]
    %v378 = vld [vmem:[#allocation4 + $0x178] sm:$0xff]
    %v379 = vld [vmem:[#allocation4 + $0x180] sm:$0xff]
    %v380 = vld [vmem:[#allocation4 + $0x188] sm:$0xff]
    %v381 = vld [vmem:[#allocation4 + $0x190] sm:$0xff]
    %v382 = vld [vmem:[#allocation4 + $0x198] sm:$0xff]
    %v383 = vld [vmem:[#allocation4 + $0x1a0] sm:$0xff]
    %v384 = vld [vmem:[#allocation4 + $0x1a8] sm:$0xff]
    %v385 = vld [vmem:[#allocation4 + $0x1b0] sm:$0xff]
    %v386 = vld [vmem:[#allocation4 + $0x1b8] sm:$0xff]
    %v387 = vld [vmem:[#allocation4 + $0x1c0] sm:$0xff]
    %v388 = vld [vmem:[#allocation4 + $0x1c8] sm:$0xff]
    %v389 = vld [vmem:[#allocation4 + $0x1d0] sm:$0xff]
    %v390 = vld [vmem:[#allocation4 + $0x1d8] sm:$0xff]
    %v391 = vld [vmem:[#allocation4 + $0x1e0] sm:$0xff]
    %v392 = vld [vmem:[#allocation4 + $0x1e8] sm:$0xff]
    %v393 = vld [vmem:[#allocation4 + $0x1f0] sm:$0xff]
    %v394 = vld [vmem:[#allocation4 + $0x1f8] sm:$0xff]
    %v395 = vld [vmem:[#allocation4 + $0x200] sm:$0xff]
    %v396 = vld [vmem:[#allocation4 + $0x208] sm:$0xff]
    %v397 = vld [vmem:[#allocation4 + $0x210] sm:$0xff]
    %v398 = vld [vmem:[#allocation4 + $0x218] sm:$0xff]
    %v399 = vld [vmem:[#allocation4 + $0x220] sm:$0xff]
    %v400 = vld [vmem:[#allocation4 + $0x228] sm:$0xff]
    %v401 = vld [vmem:[#allocation4 + $0x230] sm:$0xff]
    %v402 = vld [vmem:[#allocation4 + $0x238] sm:$0xff]
    %v403 = vld [vmem:[#allocation4 + $0x240] sm:$0xff]
    %v404 = vld [vmem:[#allocation4 + $0x248] sm:$0xff]
    %v405 = vld [vmem:[#allocation4 + $0x250] sm:$0xff]
    %v406 = vld [vmem:[#allocation4 + $0x258] sm:$0xff]
    %v407 = vld [vmem:[#allocation4 + $0x260] sm:$0xff]
    %v408 = vld [vmem:[#allocation4 + $0x268] sm:$0xff]
    %v409 = vld [vmem:[#allocation4 + $0x270] sm:$0xff]
    %v410 = vld [vmem:[#allocation4 + $0x278] sm:$0xff]
    %v411 = vld [vmem:[#allocation4 + $0x280] sm:$0xff]
    %v412 = vld [vmem:[#allocation4 + $0x288] sm:$0xff]
    %v413 = vld [vmem:[#allocation4 + $0x290] sm:$0xff]
    %v414 = vld [vmem:[#allocation4 + $0x298] sm:$0xff]
    %v415 = vld [vmem:[#allocation4 + $0x2a0] sm:$0xff]
    %v416 = vld [vmem:[#allocation4 + $0x2a8] sm:$0xff]
    %v417 = vld [vmem:[#allocation4 + $0x2b0] sm:$0xff]
    %v418 = vld [vmem:[#allocation4 + $0x2b8] sm:$0xff]
    %v419 = vld [vmem:[#allocation4 + $0x2c0] sm:$0xff]
    %v420 = vld [vmem:[#allocation4 + $0x2c8] sm:$0xff]
    %v421 = vld [vmem:[#allocation4 + $0x2d0] sm:$0xff]
    %v422 = vld [vmem:[#allocation4 + $0x2d8] sm:$0xff]
    %v423 = vld [vmem:[#allocation4 + $0x2e0] sm:$0xff]
    %v424 = vld [vmem:[#allocation4 + $0x2e8] sm:$0xff]
    %v425 = vld [vmem:[#allocation4 + $0x2f0] sm:$0xff]
    %v426 = vld [vmem:[#allocation4 + $0x2f8] sm:$0xff]
    %v427 = vld [vmem:[#allocation4 + $0x300] sm:$0xff]
    %v428 = vld [vmem:[#allocation4 + $0x308] sm:$0xff]
    %v429 = vld [vmem:[#allocation4 + $0x310] sm:$0xff]
    %v430 = vld [vmem:[#allocation4 + $0x318] sm:$0xff]
    %v431 = vld [vmem:[#allocation4 + $0x320] sm:$0xff]
    %v432 = vld [vmem:[#allocation4 + $0x328] sm:$0xff]
    %v433 = vld [vmem:[#allocation4 + $0x330] sm:$0xff]
    %v434 = vld [vmem:[#allocation4 + $0x338] sm:$0xff]
    %v435 = vld [vmem:[#allocation4 + $0x340] sm:$0xff]
    %v436 = vld [vmem:[#allocation4 + $0x348] sm:$0xff]
    %v437 = vld [vmem:[#allocation4 + $0x350] sm:$0xff]
    %v438 = vld [vmem:[#allocation4 + $0x358] sm:$0xff]
    %v439 = vld [vmem:[#allocation4 + $0x360] sm:$0xff]
    %v440 = vld [vmem:[#allocation4 + $0x368] sm:$0xff]
    %v441 = vld [vmem:[#allocation4 + $0x370] sm:$0xff]
    %v442 = vld [vmem:[#allocation4 + $0x378] sm:$0xff]
    %v443 = vld [vmem:[#allocation4 + $0x380] sm:$0xff]
    %v444 = vld [vmem:[#allocation4 + $0x388] sm:$0xff]
    %v445 = vld [vmem:[#allocation4 + $0x390] sm:$0xff]
    %v446 = vld [vmem:[#allocation4 + $0x398] sm:$0xff]
    %v447 = vld [vmem:[#allocation4 + $0x3a0] sm:$0xff]
    %v448 = vld [vmem:[#allocation4 + $0x3a8] sm:$0xff]
    %v449 = vld [vmem:[#allocation4 + $0x3b0] sm:$0xff]
    %v450 = vld [vmem:[#allocation4 + $0x3b8] sm:$0xff]
    %v451 = vld [vmem:[#allocation4 + $0x3c0] sm:$0xff]
    %v452 = vld [vmem:[#allocation4 + $0x3c8] sm:$0xff]
    %v453 = vld [vmem:[#allocation4 + $0x3d0] sm:$0xff]
    %v454 = vld [vmem:[#allocation4 + $0x3d8] sm:$0xff]
    %v455 = vld [vmem:[#allocation4 + $0x3e0] sm:$0xff]
    %v456 = vld [vmem:[#allocation4 + $0x3e8] sm:$0xff]
    %v457 = vld [vmem:[#allocation4 + $0x3f0] sm:$0xff]
    %v458 = vld [vmem:[#allocation4 + $0x3f8] sm:$0xff]
    %s459 = scalar_lea.vmem %s4, 1
    %v460 = vld [vmem:[%s459] ss:$4 sm:$0xf]
    %v462 = vperm.slane %v460, 0
    %v463 = vperm.slane %v460, 1
    %v464 = vperm.slane %v460, 2
    %v465 = vperm.slane %v460, 3
    %v598 = vunpack.c.l.b16 %v331
    %v599 = vunpack.c.h.b16 %v331
    %v600 = vunpack.c.l.b16 %v332
    %v601 = vunpack.c.h.b16 %v332
    %v602 = vunpack.c.l.b16 %v333
    %v603 = vunpack.c.h.b16 %v333
    %v604 = vunpack.c.l.b16 %v334
    %v605 = vunpack.c.h.b16 %v334
    %v606 = vunpack.c.l.b16 %v335
    %v607 = vunpack.c.h.b16 %v335
    %v608 = vunpack.c.l.b16 %v336
    %v609 = vunpack.c.h.b16 %v336
    %v610 = vunpack.c.l.b16 %v337
    %v611 = vunpack.c.h.b16 %v337
    %v612 = vunpack.c.l.b16 %v338
    %v613 = vunpack.c.h.b16 %v338
    %v614 = vunpack.c.l.b16 %v339
    %v615 = vunpack.c.h.b16 %v339
    %v616 = vunpack.c.l.b16 %v340
    %v617 = vunpack.c.h.b16 %v340
    %v618 = vunpack.c.l.b16 %v341
    %v619 = vunpack.c.h.b16 %v341
    %v620 = vunpack.c.l.b16 %v342
    %v621 = vunpack.c.h.b16 %v342
    %v622 = vunpack.c.l.b16 %v343
    %v623 = vunpack.c.h.b16 %v343
    %v624 = vunpack.c.l.b16 %v344
    %v625 = vunpack.c.h.b16 %v344
    %v626 = vunpack.c.l.b16 %v345
    %v627 = vunpack.c.h.b16 %v345
    %v628 = vunpack.c.l.b16 %v346
    %v629 = vunpack.c.h.b16 %v346
    %v630 = vunpack.c.l.b16 %v347
    %v631 = vunpack.c.h.b16 %v347
    %v632 = vunpack.c.l.b16 %v348
    %v633 = vunpack.c.h.b16 %v348
    %v634 = vunpack.c.l.b16 %v349
    %v635 = vunpack.c.h.b16 %v349
    %v636 = vunpack.c.l.b16 %v350
    %v637 = vunpack.c.h.b16 %v350
    %v638 = vunpack.c.l.b16 %v351
    %v639 = vunpack.c.h.b16 %v351
    %v640 = vunpack.c.l.b16 %v352
    %v641 = vunpack.c.h.b16 %v352
    %v642 = vunpack.c.l.b16 %v353
    %v643 = vunpack.c.h.b16 %v353
    %v644 = vunpack.c.l.b16 %v354
    %v645 = vunpack.c.h.b16 %v354
    %v646 = vunpack.c.l.b16 %v355
    %v647 = vunpack.c.h.b16 %v355
    %v648 = vunpack.c.l.b16 %v356
    %v649 = vunpack.c.h.b16 %v356
    %v650 = vunpack.c.l.b16 %v357
    %v651 = vunpack.c.h.b16 %v357
    %v652 = vunpack.c.l.b16 %v358
    %v653 = vunpack.c.h.b16 %v358
    %v654 = vunpack.c.l.b16 %v359
    %v655 = vunpack.c.h.b16 %v359
    %v656 = vunpack.c.l.b16 %v360
    %v657 = vunpack.c.h.b16 %v360
    %v658 = vunpack.c.l.b16 %v361
    %v659 = vunpack.c.h.b16 %v361
    %v660 = vunpack.c.l.b16 %v362
    %v661 = vunpack.c.h.b16 %v362
    %v662 = vunpack.c.l.b16 %v363
    %v663 = vunpack.c.h.b16 %v363
    %v664 = vunpack.c.l.b16 %v364
    %v665 = vunpack.c.h.b16 %v364
    %v666 = vunpack.c.l.b16 %v365
    %v667 = vunpack.c.h.b16 %v365
    %v668 = vunpack.c.l.b16 %v366
    %v669 = vunpack.c.h.b16 %v366
    %v670 = vunpack.c.l.b16 %v367
    %v671 = vunpack.c.h.b16 %v367
    %v672 = vunpack.c.l.b16 %v368
    %v673 = vunpack.c.h.b16 %v368
    %v674 = vunpack.c.l.b16 %v369
    %v675 = vunpack.c.h.b16 %v369
    %v676 = vunpack.c.l.b16 %v370
    %v677 = vunpack.c.h.b16 %v370
    %v678 = vunpack.c.l.b16 %v371
    %v679 = vunpack.c.h.b16 %v371
    %v680 = vunpack.c.l.b16 %v372
    %v681 = vunpack.c.h.b16 %v372
    %v682 = vunpack.c.l.b16 %v373
    %v683 = vunpack.c.h.b16 %v373
    %v684 = vunpack.c.l.b16 %v374
    %v685 = vunpack.c.h.b16 %v374
    %v686 = vunpack.c.l.b16 %v375
    %v687 = vunpack.c.h.b16 %v375
    %v688 = vunpack.c.l.b16 %v376
    %v689 = vunpack.c.h.b16 %v376
    %v690 = vunpack.c.l.b16 %v377
    %v691 = vunpack.c.h.b16 %v377
    %v692 = vunpack.c.l.b16 %v378
    %v693 = vunpack.c.h.b16 %v378
    %v694 = vunpack.c.l.b16 %v379
    %v695 = vunpack.c.h.b16 %v379
    %v696 = vunpack.c.l.b16 %v380
    %v697 = vunpack.c.h.b16 %v380
    %v698 = vunpack.c.l.b16 %v381
    %v699 = vunpack.c.h.b16 %v381
    %v700 = vunpack.c.l.b16 %v382
    %v701 = vunpack.c.h.b16 %v382
    %v702 = vunpack.c.l.b16 %v383
    %v703 = vunpack.c.h.b16 %v383
    %v704 = vunpack.c.l.b16 %v384
    %v705 = vunpack.c.h.b16 %v384
    %v706 = vunpack.c.l.b16 %v385
    %v707 = vunpack.c.h.b16 %v385
    %v708 = vunpack.c.l.b16 %v386
    %v709 = vunpack.c.h.b16 %v386
    %v710 = vunpack.c.l.b16 %v387
    %v711 = vunpack.c.h.b16 %v387
    %v712 = vunpack.c.l.b16 %v388
    %v713 = vunpack.c.h.b16 %v388
    %v714 = vunpack.c.l.b16 %v389
    %v715 = vunpack.c.h.b16 %v389
    %v716 = vunpack.c.l.b16 %v390
    %v717 = vunpack.c.h.b16 %v390
    %v718 = vunpack.c.l.b16 %v391
    %v719 = vunpack.c.h.b16 %v391
    %v720 = vunpack.c.l.b16 %v392
    %v721 = vunpack.c.h.b16 %v392
    %v722 = vunpack.c.l.b16 %v393
    %v723 = vunpack.c.h.b16 %v393
    %v724 = vunpack.c.l.b16 %v394
    %v725 = vunpack.c.h.b16 %v394
    %v726 = vunpack.c.l.b16 %v395
    %v727 = vunpack.c.h.b16 %v395
    %v728 = vunpack.c.l.b16 %v396
    %v729 = vunpack.c.h.b16 %v396
    %v730 = vunpack.c.l.b16 %v397
    %v731 = vunpack.c.h.b16 %v397
    %v732 = vunpack.c.l.b16 %v398
    %v733 = vunpack.c.h.b16 %v398
    %v734 = vunpack.c.l.b16 %v399
    %v735 = vunpack.c.h.b16 %v399
    %v736 = vunpack.c.l.b16 %v400
    %v737 = vunpack.c.h.b16 %v400
    %v738 = vunpack.c.l.b16 %v401
    %v739 = vunpack.c.h.b16 %v401
    %v740 = vunpack.c.l.b16 %v402
    %v741 = vunpack.c.h.b16 %v402
    %v742 = vunpack.c.l.b16 %v403
    %v743 = vunpack.c.h.b16 %v403
    %v744 = vunpack.c.l.b16 %v404
    %v745 = vunpack.c.h.b16 %v404
    %v746 = vunpack.c.l.b16 %v405
    %v747 = vunpack.c.h.b16 %v405
    %v748 = vunpack.c.l.b16 %v406
    %v749 = vunpack.c.h.b16 %v406
    %v750 = vunpack.c.l.b16 %v407
    %v751 = vunpack.c.h.b16 %v407
    %v752 = vunpack.c.l.b16 %v408
    %v753 = vunpack.c.h.b16 %v408
    %v754 = vunpack.c.l.b16 %v409
    %v755 = vunpack.c.h.b16 %v409
    %v756 = vunpack.c.l.b16 %v410
    %v757 = vunpack.c.h.b16 %v410
    %v758 = vunpack.c.l.b16 %v411
    %v759 = vunpack.c.h.b16 %v411
    %v760 = vunpack.c.l.b16 %v412
    %v761 = vunpack.c.h.b16 %v412
    %v762 = vunpack.c.l.b16 %v413
    %v763 = vunpack.c.h.b16 %v413
    %v764 = vunpack.c.l.b16 %v414
    %v765 = vunpack.c.h.b16 %v414
    %v766 = vunpack.c.l.b16 %v415
    %v767 = vunpack.c.h.b16 %v415
    %v768 = vunpack.c.l.b16 %v416
    %v769 = vunpack.c.h.b16 %v416
    %v770 = vunpack.c.l.b16 %v417
    %v771 = vunpack.c.h.b16 %v417
    %v772 = vunpack.c.l.b16 %v418
    %v773 = vunpack.c.h.b16 %v418
    %v774 = vunpack.c.l.b16 %v419
    %v775 = vunpack.c.h.b16 %v419
    %v776 = vunpack.c.l.b16 %v420
    %v777 = vunpack.c.h.b16 %v420
    %v778 = vunpack.c.l.b16 %v421
    %v779 = vunpack.c.h.b16 %v421
    %v780 = vunpack.c.l.b16 %v422
    %v781 = vunpack.c.h.b16 %v422
    %v782 = vunpack.c.l.b16 %v423
    %v783 = vunpack.c.h.b16 %v423
    %v784 = vunpack.c.l.b16 %v424
    %v785 = vunpack.c.h.b16 %v424
    %v786 = vunpack.c.l.b16 %v425
    %v787 = vunpack.c.h.b16 %v425
    %v788 = vunpack.c.l.b16 %v426
    %v789 = vunpack.c.h.b16 %v426
    %v790 = vunpack.c.l.b16 %v427
    %v791 = vunpack.c.h.b16 %v427
    %v792 = vunpack.c.l.b16 %v428
    %v793 = vunpack.c.h.b16 %v428
    %v794 = vunpack.c.l.b16 %v429
    %v795 = vunpack.c.h.b16 %v429
    %v796 = vunpack.c.l.b16 %v430
    %v797 = vunpack.c.h.b16 %v430
    %v798 = vunpack.c.l.b16 %v431
    %v799 = vunpack.c.h.b16 %v431
    %v800 = vunpack.c.l.b16 %v432
    %v801 = vunpack.c.h.b16 %v432
    %v802 = vunpack.c.l.b16 %v433
    %v803 = vunpack.c.h.b16 %v433
    %v804 = vunpack.c.l.b16 %v434
    %v805 = vunpack.c.h.b16 %v434
    %v806 = vunpack.c.l.b16 %v435
    %v807 = vunpack.c.h.b16 %v435
    %v808 = vunpack.c.l.b16 %v436
    %v809 = vunpack.c.h.b16 %v436
    %v810 = vunpack.c.l.b16 %v437
    %v811 = vunpack.c.h.b16 %v437
    %v812 = vunpack.c.l.b16 %v438
    %v813 = vunpack.c.h.b16 %v438
    %v814 = vunpack.c.l.b16 %v439
    %v815 = vunpack.c.h.b16 %v439
    %v816 = vunpack.c.l.b16 %v440
    %v817 = vunpack.c.h.b16 %v440
    %v818 = vunpack.c.l.b16 %v441
    %v819 = vunpack.c.h.b16 %v441
    %v820 = vunpack.c.l.b16 %v442
    %v821 = vunpack.c.h.b16 %v442
    %v822 = vunpack.c.l.b16 %v443
    %v823 = vunpack.c.h.b16 %v443
    %v824 = vunpack.c.l.b16 %v444
    %v825 = vunpack.c.h.b16 %v444
    %v826 = vunpack.c.l.b16 %v445
    %v827 = vunpack.c.h.b16 %v445
    %v828 = vunpack.c.l.b16 %v446
    %v829 = vunpack.c.h.b16 %v446
    %v830 = vunpack.c.l.b16 %v447
    %v831 = vunpack.c.h.b16 %v447
    %v832 = vunpack.c.l.b16 %v448
    %v833 = vunpack.c.h.b16 %v448
    %v834 = vunpack.c.l.b16 %v449
    %v835 = vunpack.c.h.b16 %v449
    %v836 = vunpack.c.l.b16 %v450
    %v837 = vunpack.c.h.b16 %v450
    %v838 = vunpack.c.l.b16 %v451
    %v839 = vunpack.c.h.b16 %v451
    %v840 = vunpack.c.l.b16 %v452
    %v841 = vunpack.c.h.b16 %v452
    %v842 = vunpack.c.l.b16 %v453
    %v843 = vunpack.c.h.b16 %v453
    %v844 = vunpack.c.l.b16 %v454
    %v845 = vunpack.c.h.b16 %v454
    %v846 = vunpack.c.l.b16 %v455
    %v847 = vunpack.c.h.b16 %v455
    %v848 = vunpack.c.l.b16 %v456
    %v849 = vunpack.c.h.b16 %v456
    %v850 = vunpack.c.l.b16 %v457
    %v851 = vunpack.c.h.b16 %v457
    %v852 = vunpack.c.l.b16 %v458
    %v853 = vunpack.c.h.b16 %v458
    %v854 = vpack.c.b16 %v602, %v598
    %v855 = vpack.c.b16 %v603, %v599
    %v856 = vpack.c.b16 %v604, %v600
    %v857 = vpack.c.b16 %v605, %v601
    %v858 = vpack.c.b16 %v610, %v606
    %v859 = vpack.c.b16 %v611, %v607
    %v860 = vpack.c.b16 %v612, %v608
    %v861 = vpack.c.b16 %v613, %v609
    %v862 = vpack.c.b16 %v618, %v614
    %v863 = vpack.c.b16 %v619, %v615
    %v864 = vpack.c.b16 %v620, %v616
    %v865 = vpack.c.b16 %v621, %v617
    %v866 = vpack.c.b16 %v626, %v622
    %v867 = vpack.c.b16 %v627, %v623
    %v868 = vpack.c.b16 %v628, %v624
    %v869 = vpack.c.b16 %v629, %v625
    %v870 = vpack.c.b16 %v634, %v630
    %v871 = vpack.c.b16 %v635, %v631
    %v872 = vpack.c.b16 %v636, %v632
    %v873 = vpack.c.b16 %v637, %v633
    %v874 = vpack.c.b16 %v642, %v638
    %v875 = vpack.c.b16 %v643, %v639
    %v876 = vpack.c.b16 %v644, %v640
    %v877 = vpack.c.b16 %v645, %v641
    %v878 = vpack.c.b16 %v650, %v646
    %v879 = vpack.c.b16 %v651, %v647
    %v880 = vpack.c.b16 %v652, %v648
    %v881 = vpack.c.b16 %v653, %v649
    %v882 = vpack.c.b16 %v658, %v654
    %v883 = vpack.c.b16 %v659, %v655
    %v884 = vpack.c.b16 %v660, %v656
    %v885 = vpack.c.b16 %v661, %v657
    %v886 = vpack.c.b16 %v666, %v662
    %v887 = vpack.c.b16 %v667, %v663
    %v888 = vpack.c.b16 %v668, %v664
    %v889 = vpack.c.b16 %v669, %v665
    %v890 = vpack.c.b16 %v674, %v670
    %v891 = vpack.c.b16 %v675, %v671
    %v892 = vpack.c.b16 %v676, %v672
    %v893 = vpack.c.b16 %v677, %v673
    %v894 = vpack.c.b16 %v682, %v678
    %v895 = vpack.c.b16 %v683, %v679
    %v896 = vpack.c.b16 %v684, %v680
    %v897 = vpack.c.b16 %v685, %v681
    %v898 = vpack.c.b16 %v690, %v686
    %v899 = vpack.c.b16 %v691, %v687
    %v900 = vpack.c.b16 %v692, %v688
    %v901 = vpack.c.b16 %v693, %v689
    %v902 = vpack.c.b16 %v698, %v694
    %v903 = vpack.c.b16 %v699, %v695
    %v904 = vpack.c.b16 %v700, %v696
    %v905 = vpack.c.b16 %v701, %v697
    %v906 = vpack.c.b16 %v706, %v702
    %v907 = vpack.c.b16 %v707, %v703
    %v908 = vpack.c.b16 %v708, %v704
    %v909 = vpack.c.b16 %v709, %v705
    %v910 = vpack.c.b16 %v714, %v710
    %v911 = vpack.c.b16 %v715, %v711
    %v912 = vpack.c.b16 %v716, %v712
    %v913 = vpack.c.b16 %v717, %v713
    %v914 = vpack.c.b16 %v722, %v718
    %v915 = vpack.c.b16 %v723, %v719
    %v916 = vpack.c.b16 %v724, %v720
    %v917 = vpack.c.b16 %v725, %v721
    %v918 = vpack.c.b16 %v730, %v726
    %v919 = vpack.c.b16 %v731, %v727
    %v920 = vpack.c.b16 %v732, %v728
    %v921 = vpack.c.b16 %v733, %v729
    %v922 = vpack.c.b16 %v738, %v734
    %v923 = vpack.c.b16 %v739, %v735
    %v924 = vpack.c.b16 %v740, %v736
    %v925 = vpack.c.b16 %v741, %v737
    %v926 = vpack.c.b16 %v746, %v742
    %v927 = vpack.c.b16 %v747, %v743
    %v928 = vpack.c.b16 %v748, %v744
    %v929 = vpack.c.b16 %v749, %v745
    %v930 = vpack.c.b16 %v754, %v750
    %v931 = vpack.c.b16 %v755, %v751
    %v932 = vpack.c.b16 %v756, %v752
    %v933 = vpack.c.b16 %v757, %v753
    %v934 = vpack.c.b16 %v762, %v758
    %v935 = vpack.c.b16 %v763, %v759
    %v936 = vpack.c.b16 %v764, %v760
    %v937 = vpack.c.b16 %v765, %v761
    %v938 = vpack.c.b16 %v770, %v766
    %v939 = vpack.c.b16 %v771, %v767
    %v940 = vpack.c.b16 %v772, %v768
    %v941 = vpack.c.b16 %v773, %v769
    %v942 = vpack.c.b16 %v778, %v774
    %v943 = vpack.c.b16 %v779, %v775
    %v944 = vpack.c.b16 %v780, %v776
    %v945 = vpack.c.b16 %v781, %v777
    %v946 = vpack.c.b16 %v786, %v782
    %v947 = vpack.c.b16 %v787, %v783
    %v948 = vpack.c.b16 %v788, %v784
    %v949 = vpack.c.b16 %v789, %v785
    %v950 = vpack.c.b16 %v794, %v790
    %v951 = vpack.c.b16 %v795, %v791
    %v952 = vpack.c.b16 %v796, %v792
    %v953 = vpack.c.b16 %v797, %v793
    %v954 = vpack.c.b16 %v802, %v798
    %v955 = vpack.c.b16 %v803, %v799
    %v956 = vpack.c.b16 %v804, %v800
    %v957 = vpack.c.b16 %v805, %v801
    %v958 = vpack.c.b16 %v810, %v806
    %v959 = vpack.c.b16 %v811, %v807
    %v960 = vpack.c.b16 %v812, %v808
    %v961 = vpack.c.b16 %v813, %v809
    %v962 = vpack.c.b16 %v818, %v814
    %v963 = vpack.c.b16 %v819, %v815
    %v964 = vpack.c.b16 %v820, %v816
    %v965 = vpack.c.b16 %v821, %v817
    %v966 = vpack.c.b16 %v826, %v822
    %v967 = vpack.c.b16 %v827, %v823
    %v968 = vpack.c.b16 %v828, %v824
    %v969 = vpack.c.b16 %v829, %v825
    %v970 = vpack.c.b16 %v834, %v830
    %v971 = vpack.c.b16 %v835, %v831
    %v972 = vpack.c.b16 %v836, %v832
    %v973 = vpack.c.b16 %v837, %v833
    %v974 = vpack.c.b16 %v842, %v838
    %v975 = vpack.c.b16 %v843, %v839
    %v976 = vpack.c.b16 %v844, %v840
    %v977 = vpack.c.b16 %v845, %v841
    %v978 = vpack.c.b16 %v850, %v846
    %v979 = vpack.c.b16 %v851, %v847
    %v980 = vpack.c.b16 %v852, %v848
    %v981 = vpack.c.b16 %v853, %v849
    %1110 = vmatpush.bf16.msra.mxu0 %v882
    %1111 = vmatpush.bf16.msra.mxu0 %v878
    %1112 = vmatpush.bf16.msra.mxu0 %v874
    %1113 = vmatpush.bf16.msra.mxu0 %v870
    %1114 = vmatpush.bf16.msra.mxu0 %v866
    %1115 = vmatpush.bf16.msra.mxu0 %v862
    %1116 = vmatpush.bf16.msra.mxu0 %v858
    %1117 = vmatpush.bf16.msra.mxu0 %v854
    %1118 = vmatmul.bf16.gmra.mxu0 %v327
    %v1119 = vpop.f32.mrf.mxu0
    %v1120 = vadd.f32 %v462, %v1119
    %v1121 = vpop.f32.mrf.mxu0
    %1122 = vdwg.mxu0
    %1123 = vmatpush.bf16.msra.mxu0 %v914
    %1124 = vmatpush.bf16.msra.mxu0 %v910
    %1125 = vmatpush.bf16.msra.mxu0 %v906
    %1126 = vmatpush.bf16.msra.mxu0 %v902
    %1127 = vmatpush.bf16.msra.mxu0 %v898
    %1128 = vmatpush.bf16.msra.mxu0 %v894
    %1129 = vmatpush.bf16.msra.mxu0 %v890
    %1130 = vmatpush.bf16.msra.mxu0 %v886
    %1131 = vmatmul.bf16.gmra.mxu0 %v328
    %v1132 = vpop.f32.mrf.mxu0
    %v1133 = vadd.f32 %v1120, %v1132
    %v1134 = vpop.f32.mrf.mxu0
    %1135 = vdwg.mxu0
    %1136 = vmatpush.bf16.msra.mxu0 %v946
    %1137 = vmatpush.bf16.msra.mxu0 %v942
    %1138 = vmatpush.bf16.msra.mxu0 %v938
    %1139 = vmatpush.bf16.msra.mxu0 %v934
    %1140 = vmatpush.bf16.msra.mxu0 %v930
    %1141 = vmatpush.bf16.msra.mxu0 %v926
    %1142 = vmatpush.bf16.msra.mxu0 %v922
    %1143 = vmatpush.bf16.msra.mxu0 %v918
    %1144 = vmatmul.bf16.gmra.mxu0 %v329
    %v1145 = vpop.f32.mrf.mxu0
    %v1146 = vadd.f32 %v1133, %v1145
    %v1147 = vpop.f32.mrf.mxu0
    %1148 = vdwg.mxu0
    %1149 = vmatpush.bf16.msra.mxu0 %v978
    %1150 = vmatpush.bf16.msra.mxu0 %v974
    %1151 = vmatpush.bf16.msra.mxu0 %v970
    %1152 = vmatpush.bf16.msra.mxu0 %v966
    %1153 = vmatpush.bf16.msra.mxu0 %v962
    %1154 = vmatpush.bf16.msra.mxu0 %v958
    %1155 = vmatpush.bf16.msra.mxu0 %v954
    %1156 = vmatpush.bf16.msra.mxu0 %v950
    %1157 = vmatmul.bf16.gmra.mxu0 %v330
    %v1158 = vpop.f32.mrf.mxu0
    %v1159 = vadd.f32 %v1146, %v1158
    %v1160 = vpop.f32.mrf.mxu0
    %1161 = vdwg.mxu0
    %1162 = vmatpush.bf16.msra.mxu0 %v883
    %1163 = vmatpush.bf16.msra.mxu0 %v879
    %1164 = vmatpush.bf16.msra.mxu0 %v875
    %1165 = vmatpush.bf16.msra.mxu0 %v871
    %1166 = vmatpush.bf16.msra.mxu0 %v867
    %1167 = vmatpush.bf16.msra.mxu0 %v863
    %1168 = vmatpush.bf16.msra.mxu0 %v859
    %1169 = vmatpush.bf16.msra.mxu0 %v855
    %1170 = vmatmul.bf16.gmra.mxu0 %v327
    %v1171 = vpop.f32.mrf.mxu0
    %v1172 = vadd.f32 %v463, %v1171
    %v1173 = vpop.f32.mrf.mxu0
    %1174 = vdwg.mxu0
    %1175 = vmatpush.bf16.msra.mxu0 %v915
    %1176 = vmatpush.bf16.msra.mxu0 %v911
    %1177 = vmatpush.bf16.msra.mxu0 %v907
    %1178 = vmatpush.bf16.msra.mxu0 %v903
    %1179 = vmatpush.bf16.msra.mxu0 %v899
    %1180 = vmatpush.bf16.msra.mxu0 %v895
    %1181 = vmatpush.bf16.msra.mxu0 %v891
    %1182 = vmatpush.bf16.msra.mxu0 %v887
    %1183 = vmatmul.bf16.gmra.mxu0 %v328
    %v1184 = vpop.f32.mrf.mxu0
    %v1185 = vadd.f32 %v1172, %v1184
    %v1186 = vpop.f32.mrf.mxu0
    %1187 = vdwg.mxu0
    %1188 = vmatpush.bf16.msra.mxu0 %v947
    %1189 = vmatpush.bf16.msra.mxu0 %v943
    %1190 = vmatpush.bf16.msra.mxu0 %v939
    %1191 = vmatpush.bf16.msra.mxu0 %v935
    %1192 = vmatpush.bf16.msra.mxu0 %v931
    %1193 = vmatpush.bf16.msra.mxu0 %v927
    %1194 = vmatpush.bf16.msra.mxu0 %v923
    %1195 = vmatpush.bf16.msra.mxu0 %v919
    %1196 = vmatmul.bf16.gmra.mxu0 %v329
    %v1197 = vpop.f32.mrf.mxu0
    %v1198 = vadd.f32 %v1185, %v1197
    %v1199 = vpop.f32.mrf.mxu0
    %1200 = vdwg.mxu0
    %1201 = vmatpush.bf16.msra.mxu0 %v979
    %1202 = vmatpush.bf16.msra.mxu0 %v975
    %1203 = vmatpush.bf16.msra.mxu0 %v971
    %1204 = vmatpush.bf16.msra.mxu0 %v967
    %1205 = vmatpush.bf16.msra.mxu0 %v963
    %1206 = vmatpush.bf16.msra.mxu0 %v959
    %1207 = vmatpush.bf16.msra.mxu0 %v955
    %1208 = vmatpush.bf16.msra.mxu0 %v951
    %1209 = vmatmul.bf16.gmra.mxu0 %v330
    %v1210 = vpop.f32.mrf.mxu0
    %v1211 = vadd.f32 %v1198, %v1210
    %v1212 = vpop.f32.mrf.mxu0
    %1213 = vdwg.mxu0
    %1214 = vmatpush.bf16.msra.mxu0 %v884
    %1215 = vmatpush.bf16.msra.mxu0 %v880
    %1216 = vmatpush.bf16.msra.mxu0 %v876
    %1217 = vmatpush.bf16.msra.mxu0 %v872
    %1218 = vmatpush.bf16.msra.mxu0 %v868
    %1219 = vmatpush.bf16.msra.mxu0 %v864
    %1220 = vmatpush.bf16.msra.mxu0 %v860
    %1221 = vmatpush.bf16.msra.mxu0 %v856
    %1222 = vmatmul.bf16.gmra.mxu0 %v327
    %v1223 = vpop.f32.mrf.mxu0
    %v1224 = vadd.f32 %v464, %v1223
    %v1225 = vpop.f32.mrf.mxu0
    %1226 = vdwg.mxu0
    %1227 = vmatpush.bf16.msra.mxu0 %v916
    %1228 = vmatpush.bf16.msra.mxu0 %v912
    %1229 = vmatpush.bf16.msra.mxu0 %v908
    %1230 = vmatpush.bf16.msra.mxu0 %v904
    %1231 = vmatpush.bf16.msra.mxu0 %v900
    %1232 = vmatpush.bf16.msra.mxu0 %v896
    %1233 = vmatpush.bf16.msra.mxu0 %v892
    %1234 = vmatpush.bf16.msra.mxu0 %v888
    %1235 = vmatmul.bf16.gmra.mxu0 %v328
    %v1236 = vpop.f32.mrf.mxu0
    %v1237 = vadd.f32 %v1224, %v1236
    %v1238 = vpop.f32.mrf.mxu0
    %1239 = vdwg.mxu0
    %1240 = vmatpush.bf16.msra.mxu0 %v948
    %1241 = vmatpush.bf16.msra.mxu0 %v944
    %1242 = vmatpush.bf16.msra.mxu0 %v940
    %1243 = vmatpush.bf16.msra.mxu0 %v936
    %1244 = vmatpush.bf16.msra.mxu0 %v932
    %1245 = vmatpush.bf16.msra.mxu0 %v928
    %1246 = vmatpush.bf16.msra.mxu0 %v924
    %1247 = vmatpush.bf16.msra.mxu0 %v920
    %1248 = vmatmul.bf16.gmra.mxu0 %v329
    %v1249 = vpop.f32.mrf.mxu0
    %v1250 = vadd.f32 %v1237, %v1249
    %v1251 = vpop.f32.mrf.mxu0
    %1252 = vdwg.mxu0
    %1253 = vmatpush.bf16.msra.mxu0 %v980
    %1254 = vmatpush.bf16.msra.mxu0 %v976
    %1255 = vmatpush.bf16.msra.mxu0 %v972
    %1256 = vmatpush.bf16.msra.mxu0 %v968
    %1257 = vmatpush.bf16.msra.mxu0 %v964
    %1258 = vmatpush.bf16.msra.mxu0 %v960
    %1259 = vmatpush.bf16.msra.mxu0 %v956
    %1260 = vmatpush.bf16.msra.mxu0 %v952
    %1261 = vmatmul.bf16.gmra.mxu0 %v330
    %v1262 = vpop.f32.mrf.mxu0
    %v1263 = vadd.f32 %v1250, %v1262
    %v1264 = vpop.f32.mrf.mxu0
    %1265 = vdwg.mxu0
    %1266 = vmatpush.bf16.msra.mxu0 %v885
    %1267 = vmatpush.bf16.msra.mxu0 %v881
    %1268 = vmatpush.bf16.msra.mxu0 %v877
    %1269 = vmatpush.bf16.msra.mxu0 %v873
    %1270 = vmatpush.bf16.msra.mxu0 %v869
    %1271 = vmatpush.bf16.msra.mxu0 %v865
    %1272 = vmatpush.bf16.msra.mxu0 %v861
    %1273 = vmatpush.bf16.msra.mxu0 %v857
    %1274 = vmatmul.bf16.gmra.mxu0 %v327
    %v1275 = vpop.f32.mrf.mxu0
    %v1276 = vadd.f32 %v465, %v1275
    %v1277 = vpop.f32.mrf.mxu0
    %1278 = vdwg.mxu0
    %1279 = vmatpush.bf16.msra.mxu0 %v917
    %1280 = vmatpush.bf16.msra.mxu0 %v913
    %1281 = vmatpush.bf16.msra.mxu0 %v909
    %1282 = vmatpush.bf16.msra.mxu0 %v905
    %1283 = vmatpush.bf16.msra.mxu0 %v901
    %1284 = vmatpush.bf16.msra.mxu0 %v897
    %1285 = vmatpush.bf16.msra.mxu0 %v893
    %1286 = vmatpush.bf16.msra.mxu0 %v889
    %1287 = vmatmul.bf16.gmra.mxu0 %v328
    %v1288 = vpop.f32.mrf.mxu0
    %v1289 = vadd.f32 %v1276, %v1288
    %v1290 = vpop.f32.mrf.mxu0
    %1291 = vdwg.mxu0
    %1292 = vmatpush.bf16.msra.mxu0 %v949
    %1293 = vmatpush.bf16.msra.mxu0 %v945
    %1294 = vmatpush.bf16.msra.mxu0 %v941
    %1295 = vmatpush.bf16.msra.mxu0 %v937
    %1296 = vmatpush.bf16.msra.mxu0 %v933
    %1297 = vmatpush.bf16.msra.mxu0 %v929
    %1298 = vmatpush.bf16.msra.mxu0 %v925
    %1299 = vmatpush.bf16.msra.mxu0 %v921
    %1300 = vmatmul.bf16.gmra.mxu0 %v329
    %v1301 = vpop.f32.mrf.mxu0
    %v1302 = vadd.f32 %v1289, %v1301
    %v1303 = vpop.f32.mrf.mxu0
    %1304 = vdwg.mxu0
    %1305 = vmatpush.bf16.msra.mxu0 %v981
    %1306 = vmatpush.bf16.msra.mxu0 %v977
    %1307 = vmatpush.bf16.msra.mxu0 %v973
    %1308 = vmatpush.bf16.msra.mxu0 %v969
    %1309 = vmatpush.bf16.msra.mxu0 %v965
    %1310 = vmatpush.bf16.msra.mxu0 %v961
    %1311 = vmatpush.bf16.msra.mxu0 %v957
    %1312 = vmatpush.bf16.msra.mxu0 %v953
    %1313 = vmatmul.bf16.gmra.mxu0 %v330
    %v1314 = vpop.f32.mrf.mxu0
    %v1315 = vadd.f32 %v1302, %v1314
    %v1316 = vpop.f32.mrf.mxu0
    %1317 = vdwg.mxu0
    %v1318 = vmax.f32 %v1159, 0.0
    %v1319 = vmax.f32 %v1211, 0.0
    %v1320 = vmax.f32 %v1263, 0.0
    %v1321 = vmax.f32 %v1315, 0.0
    %v1322 = vpack.c.bf16 %v1318, %v1318
    %v1323 = vpack.c.bf16 %v1319, %v1319
    %v1324 = vpack.c.bf16 %v1320, %v1320
    %v1325 = vpack.c.bf16 %v1321, %v1321
    %s1326 = scalar_lea.vmem [#allocation4], 1024
    %v1327 = vld [vmem:[%s1326] sm:$0xff]
    %v1328 = vld [vmem:[%s1326 + $0x8] sm:$0xff]
    %v1329 = vld [vmem:[%s1326 + $0x10] sm:$0xff]
    %v1330 = vld [vmem:[%s1326 + $0x18] sm:$0xff]
    %v1331 = vld [vmem:[%s1326 + $0x20] sm:$0xff]
    %v1332 = vld [vmem:[%s1326 + $0x28] sm:$0xff]
    %v1333 = vld [vmem:[%s1326 + $0x30] sm:$0xff]
    %v1334 = vld [vmem:[%s1326 + $0x38] sm:$0xff]
    %v1335 = vld [vmem:[%s1326 + $0x40] sm:$0xff]
    %v1336 = vld [vmem:[%s1326 + $0x48] sm:$0xff]
    %v1337 = vld [vmem:[%s1326 + $0x50] sm:$0xff]
    %v1338 = vld [vmem:[%s1326 + $0x58] sm:$0xff]
    %v1339 = vld [vmem:[%s1326 + $0x60] sm:$0xff]
    %v1340 = vld [vmem:[%s1326 + $0x68] sm:$0xff]
    %v1341 = vld [vmem:[%s1326 + $0x70] sm:$0xff]
    %v1342 = vld [vmem:[%s1326 + $0x78] sm:$0xff]
    %v1343 = vld [vmem:[%s1326 + $0x80] sm:$0xff]
    %v1344 = vld [vmem:[%s1326 + $0x88] sm:$0xff]
    %v1345 = vld [vmem:[%s1326 + $0x90] sm:$0xff]
    %v1346 = vld [vmem:[%s1326 + $0x98] sm:$0xff]
    %v1347 = vld [vmem:[%s1326 + $0xa0] sm:$0xff]
    %v1348 = vld [vmem:[%s1326 + $0xa8] sm:$0xff]
    %v1349 = vld [vmem:[%s1326 + $0xb0] sm:$0xff]
    %v1350 = vld [vmem:[%s1326 + $0xb8] sm:$0xff]
    %v1351 = vld [vmem:[%s1326 + $0xc0] sm:$0xff]
    %v1352 = vld [vmem:[%s1326 + $0xc8] sm:$0xff]
    %v1353 = vld [vmem:[%s1326 + $0xd0] sm:$0xff]
    %v1354 = vld [vmem:[%s1326 + $0xd8] sm:$0xff]
    %v1355 = vld [vmem:[%s1326 + $0xe0] sm:$0xff]
    %v1356 = vld [vmem:[%s1326 + $0xe8] sm:$0xff]
    %v1357 = vld [vmem:[%s1326 + $0xf0] sm:$0xff]
    %v1358 = vld [vmem:[%s1326 + $0xf8] sm:$0xff]
    %v1359 = vld [vmem:[%s1326 + $0x100] sm:$0xff]
    %v1360 = vld [vmem:[%s1326 + $0x108] sm:$0xff]
    %v1361 = vld [vmem:[%s1326 + $0x110] sm:$0xff]
    %v1362 = vld [vmem:[%s1326 + $0x118] sm:$0xff]
    %v1363 = vld [vmem:[%s1326 + $0x120] sm:$0xff]
    %v1364 = vld [vmem:[%s1326 + $0x128] sm:$0xff]
    %v1365 = vld [vmem:[%s1326 + $0x130] sm:$0xff]
    %v1366 = vld [vmem:[%s1326 + $0x138] sm:$0xff]
    %v1367 = vld [vmem:[%s1326 + $0x140] sm:$0xff]
    %v1368 = vld [vmem:[%s1326 + $0x148] sm:$0xff]
    %v1369 = vld [vmem:[%s1326 + $0x150] sm:$0xff]
    %v1370 = vld [vmem:[%s1326 + $0x158] sm:$0xff]
    %v1371 = vld [vmem:[%s1326 + $0x160] sm:$0xff]
    %v1372 = vld [vmem:[%s1326 + $0x168] sm:$0xff]
    %v1373 = vld [vmem:[%s1326 + $0x170] sm:$0xff]
    %v1374 = vld [vmem:[%s1326 + $0x178] sm:$0xff]
    %v1375 = vld [vmem:[%s1326 + $0x180] sm:$0xff]
    %v1376 = vld [vmem:[%s1326 + $0x188] sm:$0xff]
    %v1377 = vld [vmem:[%s1326 + $0x190] sm:$0xff]
    %v1378 = vld [vmem:[%s1326 + $0x198] sm:$0xff]
    %v1379 = vld [vmem:[%s1326 + $0x1a0] sm:$0xff]
    %v1380 = vld [vmem:[%s1326 + $0x1a8] sm:$0xff]
    %v1381 = vld [vmem:[%s1326 + $0x1b0] sm:$0xff]
    %v1382 = vld [vmem:[%s1326 + $0x1b8] sm:$0xff]
    %v1383 = vld [vmem:[%s1326 + $0x1c0] sm:$0xff]
    %v1384 = vld [vmem:[%s1326 + $0x1c8] sm:$0xff]
    %v1385 = vld [vmem:[%s1326 + $0x1d0] sm:$0xff]
    %v1386 = vld [vmem:[%s1326 + $0x1d8] sm:$0xff]
    %v1387 = vld [vmem:[%s1326 + $0x1e0] sm:$0xff]
    %v1388 = vld [vmem:[%s1326 + $0x1e8] sm:$0xff]
    %v1389 = vld [vmem:[%s1326 + $0x1f0] sm:$0xff]
    %v1390 = vld [vmem:[%s1326 + $0x1f8] sm:$0xff]
    %v1391 = vld [vmem:[%s1326 + $0x200] sm:$0xff]
    %v1392 = vld [vmem:[%s1326 + $0x208] sm:$0xff]
    %v1393 = vld [vmem:[%s1326 + $0x210] sm:$0xff]
    %v1394 = vld [vmem:[%s1326 + $0x218] sm:$0xff]
    %v1395 = vld [vmem:[%s1326 + $0x220] sm:$0xff]
    %v1396 = vld [vmem:[%s1326 + $0x228] sm:$0xff]
    %v1397 = vld [vmem:[%s1326 + $0x230] sm:$0xff]
    %v1398 = vld [vmem:[%s1326 + $0x238] sm:$0xff]
    %v1399 = vld [vmem:[%s1326 + $0x240] sm:$0xff]
    %v1400 = vld [vmem:[%s1326 + $0x248] sm:$0xff]
    %v1401 = vld [vmem:[%s1326 + $0x250] sm:$0xff]
    %v1402 = vld [vmem:[%s1326 + $0x258] sm:$0xff]
    %v1403 = vld [vmem:[%s1326 + $0x260] sm:$0xff]
    %v1404 = vld [vmem:[%s1326 + $0x268] sm:$0xff]
    %v1405 = vld [vmem:[%s1326 + $0x270] sm:$0xff]
    %v1406 = vld [vmem:[%s1326 + $0x278] sm:$0xff]
    %v1407 = vld [vmem:[%s1326 + $0x280] sm:$0xff]
    %v1408 = vld [vmem:[%s1326 + $0x288] sm:$0xff]
    %v1409 = vld [vmem:[%s1326 + $0x290] sm:$0xff]
    %v1410 = vld [vmem:[%s1326 + $0x298] sm:$0xff]
    %v1411 = vld [vmem:[%s1326 + $0x2a0] sm:$0xff]
    %v1412 = vld [vmem:[%s1326 + $0x2a8] sm:$0xff]
    %v1413 = vld [vmem:[%s1326 + $0x2b0] sm:$0xff]
    %v1414 = vld [vmem:[%s1326 + $0x2b8] sm:$0xff]
    %v1415 = vld [vmem:[%s1326 + $0x2c0] sm:$0xff]
    %v1416 = vld [vmem:[%s1326 + $0x2c8] sm:$0xff]
    %v1417 = vld [vmem:[%s1326 + $0x2d0] sm:$0xff]
    %v1418 = vld [vmem:[%s1326 + $0x2d8] sm:$0xff]
    %v1419 = vld [vmem:[%s1326 + $0x2e0] sm:$0xff]
    %v1420 = vld [vmem:[%s1326 + $0x2e8] sm:$0xff]
    %v1421 = vld [vmem:[%s1326 + $0x2f0] sm:$0xff]
    %v1422 = vld [vmem:[%s1326 + $0x2f8] sm:$0xff]
    %v1423 = vld [vmem:[%s1326 + $0x300] sm:$0xff]
    %v1424 = vld [vmem:[%s1326 + $0x308] sm:$0xff]
    %v1425 = vld [vmem:[%s1326 + $0x310] sm:$0xff]
    %v1426 = vld [vmem:[%s1326 + $0x318] sm:$0xff]
    %v1427 = vld [vmem:[%s1326 + $0x320] sm:$0xff]
    %v1428 = vld [vmem:[%s1326 + $0x328] sm:$0xff]
    %v1429 = vld [vmem:[%s1326 + $0x330] sm:$0xff]
    %v1430 = vld [vmem:[%s1326 + $0x338] sm:$0xff]
    %v1431 = vld [vmem:[%s1326 + $0x340] sm:$0xff]
    %v1432 = vld [vmem:[%s1326 + $0x348] sm:$0xff]
    %v1433 = vld [vmem:[%s1326 + $0x350] sm:$0xff]
    %v1434 = vld [vmem:[%s1326 + $0x358] sm:$0xff]
    %v1435 = vld [vmem:[%s1326 + $0x360] sm:$0xff]
    %v1436 = vld [vmem:[%s1326 + $0x368] sm:$0xff]
    %v1437 = vld [vmem:[%s1326 + $0x370] sm:$0xff]
    %v1438 = vld [vmem:[%s1326 + $0x378] sm:$0xff]
    %v1439 = vld [vmem:[%s1326 + $0x380] sm:$0xff]
    %v1440 = vld [vmem:[%s1326 + $0x388] sm:$0xff]
    %v1441 = vld [vmem:[%s1326 + $0x390] sm:$0xff]
    %v1442 = vld [vmem:[%s1326 + $0x398] sm:$0xff]
    %v1443 = vld [vmem:[%s1326 + $0x3a0] sm:$0xff]
    %v1444 = vld [vmem:[%s1326 + $0x3a8] sm:$0xff]
    %v1445 = vld [vmem:[%s1326 + $0x3b0] sm:$0xff]
    %v1446 = vld [vmem:[%s1326 + $0x3b8] sm:$0xff]
    %v1447 = vld [vmem:[%s1326 + $0x3c0] sm:$0xff]
    %v1448 = vld [vmem:[%s1326 + $0x3c8] sm:$0xff]
    %v1449 = vld [vmem:[%s1326 + $0x3d0] sm:$0xff]
    %v1450 = vld [vmem:[%s1326 + $0x3d8] sm:$0xff]
    %v1451 = vld [vmem:[%s1326 + $0x3e0] sm:$0xff]
    %v1452 = vld [vmem:[%s1326 + $0x3e8] sm:$0xff]
    %v1453 = vld [vmem:[%s1326 + $0x3f0] sm:$0xff]
    %v1454 = vld [vmem:[%s1326 + $0x3f8] sm:$0xff]
    %s1455 = scalar_lea.vmem %s4, 2
    %v1456 = vld [vmem:[%s1455] ss:$4 sm:$0xf]
    %v1458 = vperm.slane %v1456, 0
    %v1459 = vperm.slane %v1456, 1
    %v1460 = vperm.slane %v1456, 2
    %v1461 = vperm.slane %v1456, 3
    %v1594 = vunpack.c.l.b16 %v1327
    %v1595 = vunpack.c.h.b16 %v1327
    %v1596 = vunpack.c.l.b16 %v1328
    %v1597 = vunpack.c.h.b16 %v1328
    %v1598 = vunpack.c.l.b16 %v1329
    %v1599 = vunpack.c.h.b16 %v1329
    %v1600 = vunpack.c.l.b16 %v1330
    %v1601 = vunpack.c.h.b16 %v1330
    %v1602 = vunpack.c.l.b16 %v1331
    %v1603 = vunpack.c.h.b16 %v1331
    %v1604 = vunpack.c.l.b16 %v1332
    %v1605 = vunpack.c.h.b16 %v1332
    %v1606 = vunpack.c.l.b16 %v1333
    %v1607 = vunpack.c.h.b16 %v1333
    %v1608 = vunpack.c.l.b16 %v1334
    %v1609 = vunpack.c.h.b16 %v1334
    %v1610 = vunpack.c.l.b16 %v1335
    %v1611 = vunpack.c.h.b16 %v1335
    %v1612 = vunpack.c.l.b16 %v1336
    %v1613 = vunpack.c.h.b16 %v1336
    %v1614 = vunpack.c.l.b16 %v1337
    %v1615 = vunpack.c.h.b16 %v1337
    %v1616 = vunpack.c.l.b16 %v1338
    %v1617 = vunpack.c.h.b16 %v1338
    %v1618 = vunpack.c.l.b16 %v1339
    %v1619 = vunpack.c.h.b16 %v1339
    %v1620 = vunpack.c.l.b16 %v1340
    %v1621 = vunpack.c.h.b16 %v1340
    %v1622 = vunpack.c.l.b16 %v1341
    %v1623 = vunpack.c.h.b16 %v1341
    %v1624 = vunpack.c.l.b16 %v1342
    %v1625 = vunpack.c.h.b16 %v1342
    %v1626 = vunpack.c.l.b16 %v1343
    %v1627 = vunpack.c.h.b16 %v1343
    %v1628 = vunpack.c.l.b16 %v1344
    %v1629 = vunpack.c.h.b16 %v1344
    %v1630 = vunpack.c.l.b16 %v1345
    %v1631 = vunpack.c.h.b16 %v1345
    %v1632 = vunpack.c.l.b16 %v1346
    %v1633 = vunpack.c.h.b16 %v1346
    %v1634 = vunpack.c.l.b16 %v1347
    %v1635 = vunpack.c.h.b16 %v1347
    %v1636 = vunpack.c.l.b16 %v1348
    %v1637 = vunpack.c.h.b16 %v1348
    %v1638 = vunpack.c.l.b16 %v1349
    %v1639 = vunpack.c.h.b16 %v1349
    %v1640 = vunpack.c.l.b16 %v1350
    %v1641 = vunpack.c.h.b16 %v1350
    %v1642 = vunpack.c.l.b16 %v1351
    %v1643 = vunpack.c.h.b16 %v1351
    %v1644 = vunpack.c.l.b16 %v1352
    %v1645 = vunpack.c.h.b16 %v1352
    %v1646 = vunpack.c.l.b16 %v1353
    %v1647 = vunpack.c.h.b16 %v1353
    %v1648 = vunpack.c.l.b16 %v1354
    %v1649 = vunpack.c.h.b16 %v1354
    %v1650 = vunpack.c.l.b16 %v1355
    %v1651 = vunpack.c.h.b16 %v1355
    %v1652 = vunpack.c.l.b16 %v1356
    %v1653 = vunpack.c.h.b16 %v1356
    %v1654 = vunpack.c.l.b16 %v1357
    %v1655 = vunpack.c.h.b16 %v1357
    %v1656 = vunpack.c.l.b16 %v1358
    %v1657 = vunpack.c.h.b16 %v1358
    %v1658 = vunpack.c.l.b16 %v1359
    %v1659 = vunpack.c.h.b16 %v1359
    %v1660 = vunpack.c.l.b16 %v1360
    %v1661 = vunpack.c.h.b16 %v1360
    %v1662 = vunpack.c.l.b16 %v1361
    %v1663 = vunpack.c.h.b16 %v1361
    %v1664 = vunpack.c.l.b16 %v1362
    %v1665 = vunpack.c.h.b16 %v1362
    %v1666 = vunpack.c.l.b16 %v1363
    %v1667 = vunpack.c.h.b16 %v1363
    %v1668 = vunpack.c.l.b16 %v1364
    %v1669 = vunpack.c.h.b16 %v1364
    %v1670 = vunpack.c.l.b16 %v1365
    %v1671 = vunpack.c.h.b16 %v1365
    %v1672 = vunpack.c.l.b16 %v1366
    %v1673 = vunpack.c.h.b16 %v1366
    %v1674 = vunpack.c.l.b16 %v1367
    %v1675 = vunpack.c.h.b16 %v1367
    %v1676 = vunpack.c.l.b16 %v1368
    %v1677 = vunpack.c.h.b16 %v1368
    %v1678 = vunpack.c.l.b16 %v1369
    %v1679 = vunpack.c.h.b16 %v1369
    %v1680 = vunpack.c.l.b16 %v1370
    %v1681 = vunpack.c.h.b16 %v1370
    %v1682 = vunpack.c.l.b16 %v1371
    %v1683 = vunpack.c.h.b16 %v1371
    %v1684 = vunpack.c.l.b16 %v1372
    %v1685 = vunpack.c.h.b16 %v1372
    %v1686 = vunpack.c.l.b16 %v1373
    %v1687 = vunpack.c.h.b16 %v1373
    %v1688 = vunpack.c.l.b16 %v1374
    %v1689 = vunpack.c.h.b16 %v1374
    %v1690 = vunpack.c.l.b16 %v1375
    %v1691 = vunpack.c.h.b16 %v1375
    %v1692 = vunpack.c.l.b16 %v1376
    %v1693 = vunpack.c.h.b16 %v1376
    %v1694 = vunpack.c.l.b16 %v1377
    %v1695 = vunpack.c.h.b16 %v1377
    %v1696 = vunpack.c.l.b16 %v1378
    %v1697 = vunpack.c.h.b16 %v1378
    %v1698 = vunpack.c.l.b16 %v1379
    %v1699 = vunpack.c.h.b16 %v1379
    %v1700 = vunpack.c.l.b16 %v1380
    %v1701 = vunpack.c.h.b16 %v1380
    %v1702 = vunpack.c.l.b16 %v1381
    %v1703 = vunpack.c.h.b16 %v1381
    %v1704 = vunpack.c.l.b16 %v1382
    %v1705 = vunpack.c.h.b16 %v1382
    %v1706 = vunpack.c.l.b16 %v1383
    %v1707 = vunpack.c.h.b16 %v1383
    %v1708 = vunpack.c.l.b16 %v1384
    %v1709 = vunpack.c.h.b16 %v1384
    %v1710 = vunpack.c.l.b16 %v1385
    %v1711 = vunpack.c.h.b16 %v1385
    %v1712 = vunpack.c.l.b16 %v1386
    %v1713 = vunpack.c.h.b16 %v1386
    %v1714 = vunpack.c.l.b16 %v1387
    %v1715 = vunpack.c.h.b16 %v1387
    %v1716 = vunpack.c.l.b16 %v1388
    %v1717 = vunpack.c.h.b16 %v1388
    %v1718 = vunpack.c.l.b16 %v1389
    %v1719 = vunpack.c.h.b16 %v1389
    %v1720 = vunpack.c.l.b16 %v1390
    %v1721 = vunpack.c.h.b16 %v1390
    %v1722 = vunpack.c.l.b16 %v1391
    %v1723 = vunpack.c.h.b16 %v1391
    %v1724 = vunpack.c.l.b16 %v1392
    %v1725 = vunpack.c.h.b16 %v1392
    %v1726 = vunpack.c.l.b16 %v1393
    %v1727 = vunpack.c.h.b16 %v1393
    %v1728 = vunpack.c.l.b16 %v1394
    %v1729 = vunpack.c.h.b16 %v1394
    %v1730 = vunpack.c.l.b16 %v1395
    %v1731 = vunpack.c.h.b16 %v1395
    %v1732 = vunpack.c.l.b16 %v1396
    %v1733 = vunpack.c.h.b16 %v1396
    %v1734 = vunpack.c.l.b16 %v1397
    %v1735 = vunpack.c.h.b16 %v1397
    %v1736 = vunpack.c.l.b16 %v1398
    %v1737 = vunpack.c.h.b16 %v1398
    %v1738 = vunpack.c.l.b16 %v1399
    %v1739 = vunpack.c.h.b16 %v1399
    %v1740 = vunpack.c.l.b16 %v1400
    %v1741 = vunpack.c.h.b16 %v1400
    %v1742 = vunpack.c.l.b16 %v1401
    %v1743 = vunpack.c.h.b16 %v1401
    %v1744 = vunpack.c.l.b16 %v1402
    %v1745 = vunpack.c.h.b16 %v1402
    %v1746 = vunpack.c.l.b16 %v1403
    %v1747 = vunpack.c.h.b16 %v1403
    %v1748 = vunpack.c.l.b16 %v1404
    %v1749 = vunpack.c.h.b16 %v1404
    %v1750 = vunpack.c.l.b16 %v1405
    %v1751 = vunpack.c.h.b16 %v1405
    %v1752 = vunpack.c.l.b16 %v1406
    %v1753 = vunpack.c.h.b16 %v1406
    %v1754 = vunpack.c.l.b16 %v1407
    %v1755 = vunpack.c.h.b16 %v1407
    %v1756 = vunpack.c.l.b16 %v1408
    %v1757 = vunpack.c.h.b16 %v1408
    %v1758 = vunpack.c.l.b16 %v1409
    %v1759 = vunpack.c.h.b16 %v1409
    %v1760 = vunpack.c.l.b16 %v1410
    %v1761 = vunpack.c.h.b16 %v1410
    %v1762 = vunpack.c.l.b16 %v1411
    %v1763 = vunpack.c.h.b16 %v1411
    %v1764 = vunpack.c.l.b16 %v1412
    %v1765 = vunpack.c.h.b16 %v1412
    %v1766 = vunpack.c.l.b16 %v1413
    %v1767 = vunpack.c.h.b16 %v1413
    %v1768 = vunpack.c.l.b16 %v1414
    %v1769 = vunpack.c.h.b16 %v1414
    %v1770 = vunpack.c.l.b16 %v1415
    %v1771 = vunpack.c.h.b16 %v1415
    %v1772 = vunpack.c.l.b16 %v1416
    %v1773 = vunpack.c.h.b16 %v1416
    %v1774 = vunpack.c.l.b16 %v1417
    %v1775 = vunpack.c.h.b16 %v1417
    %v1776 = vunpack.c.l.b16 %v1418
    %v1777 = vunpack.c.h.b16 %v1418
    %v1778 = vunpack.c.l.b16 %v1419
    %v1779 = vunpack.c.h.b16 %v1419
    %v1780 = vunpack.c.l.b16 %v1420
    %v1781 = vunpack.c.h.b16 %v1420
    %v1782 = vunpack.c.l.b16 %v1421
    %v1783 = vunpack.c.h.b16 %v1421
    %v1784 = vunpack.c.l.b16 %v1422
    %v1785 = vunpack.c.h.b16 %v1422
    %v1786 = vunpack.c.l.b16 %v1423
    %v1787 = vunpack.c.h.b16 %v1423
    %v1788 = vunpack.c.l.b16 %v1424
    %v1789 = vunpack.c.h.b16 %v1424
    %v1790 = vunpack.c.l.b16 %v1425
    %v1791 = vunpack.c.h.b16 %v1425
    %v1792 = vunpack.c.l.b16 %v1426
    %v1793 = vunpack.c.h.b16 %v1426
    %v1794 = vunpack.c.l.b16 %v1427
    %v1795 = vunpack.c.h.b16 %v1427
    %v1796 = vunpack.c.l.b16 %v1428
    %v1797 = vunpack.c.h.b16 %v1428
    %v1798 = vunpack.c.l.b16 %v1429
    %v1799 = vunpack.c.h.b16 %v1429
    %v1800 = vunpack.c.l.b16 %v1430
    %v1801 = vunpack.c.h.b16 %v1430
    %v1802 = vunpack.c.l.b16 %v1431
    %v1803 = vunpack.c.h.b16 %v1431
    %v1804 = vunpack.c.l.b16 %v1432
    %v1805 = vunpack.c.h.b16 %v1432
    %v1806 = vunpack.c.l.b16 %v1433
    %v1807 = vunpack.c.h.b16 %v1433
    %v1808 = vunpack.c.l.b16 %v1434
    %v1809 = vunpack.c.h.b16 %v1434
    %v1810 = vunpack.c.l.b16 %v1435
    %v1811 = vunpack.c.h.b16 %v1435
    %v1812 = vunpack.c.l.b16 %v1436
    %v1813 = vunpack.c.h.b16 %v1436
    %v1814 = vunpack.c.l.b16 %v1437
    %v1815 = vunpack.c.h.b16 %v1437
    %v1816 = vunpack.c.l.b16 %v1438
    %v1817 = vunpack.c.h.b16 %v1438
    %v1818 = vunpack.c.l.b16 %v1439
    %v1819 = vunpack.c.h.b16 %v1439
    %v1820 = vunpack.c.l.b16 %v1440
    %v1821 = vunpack.c.h.b16 %v1440
    %v1822 = vunpack.c.l.b16 %v1441
    %v1823 = vunpack.c.h.b16 %v1441
    %v1824 = vunpack.c.l.b16 %v1442
    %v1825 = vunpack.c.h.b16 %v1442
    %v1826 = vunpack.c.l.b16 %v1443
    %v1827 = vunpack.c.h.b16 %v1443
    %v1828 = vunpack.c.l.b16 %v1444
    %v1829 = vunpack.c.h.b16 %v1444
    %v1830 = vunpack.c.l.b16 %v1445
    %v1831 = vunpack.c.h.b16 %v1445
    %v1832 = vunpack.c.l.b16 %v1446
    %v1833 = vunpack.c.h.b16 %v1446
    %v1834 = vunpack.c.l.b16 %v1447
    %v1835 = vunpack.c.h.b16 %v1447
    %v1836 = vunpack.c.l.b16 %v1448
    %v1837 = vunpack.c.h.b16 %v1448
    %v1838 = vunpack.c.l.b16 %v1449
    %v1839 = vunpack.c.h.b16 %v1449
    %v1840 = vunpack.c.l.b16 %v1450
    %v1841 = vunpack.c.h.b16 %v1450
    %v1842 = vunpack.c.l.b16 %v1451
    %v1843 = vunpack.c.h.b16 %v1451
    %v1844 = vunpack.c.l.b16 %v1452
    %v1845 = vunpack.c.h.b16 %v1452
    %v1846 = vunpack.c.l.b16 %v1453
    %v1847 = vunpack.c.h.b16 %v1453
    %v1848 = vunpack.c.l.b16 %v1454
    %v1849 = vunpack.c.h.b16 %v1454
    %v1850 = vpack.c.b16 %v1598, %v1594
    %v1851 = vpack.c.b16 %v1599, %v1595
    %v1852 = vpack.c.b16 %v1600, %v1596
    %v1853 = vpack.c.b16 %v1601, %v1597
    %v1854 = vpack.c.b16 %v1606, %v1602
    %v1855 = vpack.c.b16 %v1607, %v1603
    %v1856 = vpack.c.b16 %v1608, %v1604
    %v1857 = vpack.c.b16 %v1609, %v1605
    %v1858 = vpack.c.b16 %v1614, %v1610
    %v1859 = vpack.c.b16 %v1615, %v1611
    %v1860 = vpack.c.b16 %v1616, %v1612
    %v1861 = vpack.c.b16 %v1617, %v1613
    %v1862 = vpack.c.b16 %v1622, %v1618
    %v1863 = vpack.c.b16 %v1623, %v1619
    %v1864 = vpack.c.b16 %v1624, %v1620
    %v1865 = vpack.c.b16 %v1625, %v1621
    %v1866 = vpack.c.b16 %v1630, %v1626
    %v1867 = vpack.c.b16 %v1631, %v1627
    %v1868 = vpack.c.b16 %v1632, %v1628
    %v1869 = vpack.c.b16 %v1633, %v1629
    %v1870 = vpack.c.b16 %v1638, %v1634
    %v1871 = vpack.c.b16 %v1639, %v1635
    %v1872 = vpack.c.b16 %v1640, %v1636
    %v1873 = vpack.c.b16 %v1641, %v1637
    %v1874 = vpack.c.b16 %v1646, %v1642
    %v1875 = vpack.c.b16 %v1647, %v1643
    %v1876 = vpack.c.b16 %v1648, %v1644
    %v1877 = vpack.c.b16 %v1649, %v1645
    %v1878 = vpack.c.b16 %v1654, %v1650
    %v1879 = vpack.c.b16 %v1655, %v1651
    %v1880 = vpack.c.b16 %v1656, %v1652
    %v1881 = vpack.c.b16 %v1657, %v1653
    %v1882 = vpack.c.b16 %v1662, %v1658
    %v1883 = vpack.c.b16 %v1663, %v1659
    %v1884 = vpack.c.b16 %v1664, %v1660
    %v1885 = vpack.c.b16 %v1665, %v1661
    %v1886 = vpack.c.b16 %v1670, %v1666
    %v1887 = vpack.c.b16 %v1671, %v1667
    %v1888 = vpack.c.b16 %v1672, %v1668
    %v1889 = vpack.c.b16 %v1673, %v1669
    %v1890 = vpack.c.b16 %v1678, %v1674
    %v1891 = vpack.c.b16 %v1679, %v1675
    %v1892 = vpack.c.b16 %v1680, %v1676
    %v1893 = vpack.c.b16 %v1681, %v1677
    %v1894 = vpack.c.b16 %v1686, %v1682
    %v1895 = vpack.c.b16 %v1687, %v1683
    %v1896 = vpack.c.b16 %v1688, %v1684
    %v1897 = vpack.c.b16 %v1689, %v1685
    %v1898 = vpack.c.b16 %v1694, %v1690
    %v1899 = vpack.c.b16 %v1695, %v1691
    %v1900 = vpack.c.b16 %v1696, %v1692
    %v1901 = vpack.c.b16 %v1697, %v1693
    %v1902 = vpack.c.b16 %v1702, %v1698
    %v1903 = vpack.c.b16 %v1703, %v1699
    %v1904 = vpack.c.b16 %v1704, %v1700
    %v1905 = vpack.c.b16 %v1705, %v1701
    %v1906 = vpack.c.b16 %v1710, %v1706
    %v1907 = vpack.c.b16 %v1711, %v1707
    %v1908 = vpack.c.b16 %v1712, %v1708
    %v1909 = vpack.c.b16 %v1713, %v1709
    %v1910 = vpack.c.b16 %v1718, %v1714
    %v1911 = vpack.c.b16 %v1719, %v1715
    %v1912 = vpack.c.b16 %v1720, %v1716
    %v1913 = vpack.c.b16 %v1721, %v1717
    %v1914 = vpack.c.b16 %v1726, %v1722
    %v1915 = vpack.c.b16 %v1727, %v1723
    %v1916 = vpack.c.b16 %v1728, %v1724
    %v1917 = vpack.c.b16 %v1729, %v1725
    %v1918 = vpack.c.b16 %v1734, %v1730
    %v1919 = vpack.c.b16 %v1735, %v1731
    %v1920 = vpack.c.b16 %v1736, %v1732
    %v1921 = vpack.c.b16 %v1737, %v1733
    %v1922 = vpack.c.b16 %v1742, %v1738
    %v1923 = vpack.c.b16 %v1743, %v1739
    %v1924 = vpack.c.b16 %v1744, %v1740
    %v1925 = vpack.c.b16 %v1745, %v1741
    %v1926 = vpack.c.b16 %v1750, %v1746
    %v1927 = vpack.c.b16 %v1751, %v1747
    %v1928 = vpack.c.b16 %v1752, %v1748
    %v1929 = vpack.c.b16 %v1753, %v1749
    %v1930 = vpack.c.b16 %v1758, %v1754
    %v1931 = vpack.c.b16 %v1759, %v1755
    %v1932 = vpack.c.b16 %v1760, %v1756
    %v1933 = vpack.c.b16 %v1761, %v1757
    %v1934 = vpack.c.b16 %v1766, %v1762
    %v1935 = vpack.c.b16 %v1767, %v1763
    %v1936 = vpack.c.b16 %v1768, %v1764
    %v1937 = vpack.c.b16 %v1769, %v1765
    %v1938 = vpack.c.b16 %v1774, %v1770
    %v1939 = vpack.c.b16 %v1775, %v1771
    %v1940 = vpack.c.b16 %v1776, %v1772
    %v1941 = vpack.c.b16 %v1777, %v1773
    %v1942 = vpack.c.b16 %v1782, %v1778
    %v1943 = vpack.c.b16 %v1783, %v1779
    %v1944 = vpack.c.b16 %v1784, %v1780
    %v1945 = vpack.c.b16 %v1785, %v1781
    %v1946 = vpack.c.b16 %v1790, %v1786
    %v1947 = vpack.c.b16 %v1791, %v1787
    %v1948 = vpack.c.b16 %v1792, %v1788
    %v1949 = vpack.c.b16 %v1793, %v1789
    %v1950 = vpack.c.b16 %v1798, %v1794
    %v1951 = vpack.c.b16 %v1799, %v1795
    %v1952 = vpack.c.b16 %v1800, %v1796
    %v1953 = vpack.c.b16 %v1801, %v1797
    %v1954 = vpack.c.b16 %v1806, %v1802
    %v1955 = vpack.c.b16 %v1807, %v1803
    %v1956 = vpack.c.b16 %v1808, %v1804
    %v1957 = vpack.c.b16 %v1809, %v1805
    %v1958 = vpack.c.b16 %v1814, %v1810
    %v1959 = vpack.c.b16 %v1815, %v1811
    %v1960 = vpack.c.b16 %v1816, %v1812
    %v1961 = vpack.c.b16 %v1817, %v1813
    %v1962 = vpack.c.b16 %v1822, %v1818
    %v1963 = vpack.c.b16 %v1823, %v1819
    %v1964 = vpack.c.b16 %v1824, %v1820
    %v1965 = vpack.c.b16 %v1825, %v1821
    %v1966 = vpack.c.b16 %v1830, %v1826
    %v1967 = vpack.c.b16 %v1831, %v1827
    %v1968 = vpack.c.b16 %v1832, %v1828
    %v1969 = vpack.c.b16 %v1833, %v1829
    %v1970 = vpack.c.b16 %v1838, %v1834
    %v1971 = vpack.c.b16 %v1839, %v1835
    %v1972 = vpack.c.b16 %v1840, %v1836
    %v1973 = vpack.c.b16 %v1841, %v1837
    %v1974 = vpack.c.b16 %v1846, %v1842
    %v1975 = vpack.c.b16 %v1847, %v1843
    %v1976 = vpack.c.b16 %v1848, %v1844
    %v1977 = vpack.c.b16 %v1849, %v1845
    %2106 = vmatpush.bf16.msra.mxu0 %v1878
    %2107 = vmatpush.bf16.msra.mxu0 %v1874
    %2108 = vmatpush.bf16.msra.mxu0 %v1870
    %2109 = vmatpush.bf16.msra.mxu0 %v1866
    %2110 = vmatpush.bf16.msra.mxu0 %v1862
    %2111 = vmatpush.bf16.msra.mxu0 %v1858
    %2112 = vmatpush.bf16.msra.mxu0 %v1854
    %2113 = vmatpush.bf16.msra.mxu0 %v1850
    %2114 = vmatmul.bf16.gmra.mxu0 %v1322
    %v2115 = vpop.f32.mrf.mxu0
    %v2116 = vadd.f32 %v1458, %v2115
    %v2117 = vpop.f32.mrf.mxu0
    %2118 = vdwg.mxu0
    %2119 = vmatpush.bf16.msra.mxu0 %v1910
    %2120 = vmatpush.bf16.msra.mxu0 %v1906
    %2121 = vmatpush.bf16.msra.mxu0 %v1902
    %2122 = vmatpush.bf16.msra.mxu0 %v1898
    %2123 = vmatpush.bf16.msra.mxu0 %v1894
    %2124 = vmatpush.bf16.msra.mxu0 %v1890
    %2125 = vmatpush.bf16.msra.mxu0 %v1886
    %2126 = vmatpush.bf16.msra.mxu0 %v1882
    %2127 = vmatmul.bf16.gmra.mxu0 %v1323
    %v2128 = vpop.f32.mrf.mxu0
    %v2129 = vadd.f32 %v2116, %v2128
    %v2130 = vpop.f32.mrf.mxu0
    %2131 = vdwg.mxu0
    %2132 = vmatpush.bf16.msra.mxu0 %v1942
    %2133 = vmatpush.bf16.msra.mxu0 %v1938
    %2134 = vmatpush.bf16.msra.mxu0 %v1934
    %2135 = vmatpush.bf16.msra.mxu0 %v1930
    %2136 = vmatpush.bf16.msra.mxu0 %v1926
    %2137 = vmatpush.bf16.msra.mxu0 %v1922
    %2138 = vmatpush.bf16.msra.mxu0 %v1918
    %2139 = vmatpush.bf16.msra.mxu0 %v1914
    %2140 = vmatmul.bf16.gmra.mxu0 %v1324
    %v2141 = vpop.f32.mrf.mxu0
    %v2142 = vadd.f32 %v2129, %v2141
    %v2143 = vpop.f32.mrf.mxu0
    %2144 = vdwg.mxu0
    %2145 = vmatpush.bf16.msra.mxu0 %v1974
    %2146 = vmatpush.bf16.msra.mxu0 %v1970
    %2147 = vmatpush.bf16.msra.mxu0 %v1966
    %2148 = vmatpush.bf16.msra.mxu0 %v1962
    %2149 = vmatpush.bf16.msra.mxu0 %v1958
    %2150 = vmatpush.bf16.msra.mxu0 %v1954
    %2151 = vmatpush.bf16.msra.mxu0 %v1950
    %2152 = vmatpush.bf16.msra.mxu0 %v1946
    %2153 = vmatmul.bf16.gmra.mxu0 %v1325
    %v2154 = vpop.f32.mrf.mxu0
    %v2155 = vadd.f32 %v2142, %v2154
    %v2156 = vpop.f32.mrf.mxu0
    %2157 = vdwg.mxu0
    %2158 = vmatpush.bf16.msra.mxu0 %v1879
    %2159 = vmatpush.bf16.msra.mxu0 %v1875
    %2160 = vmatpush.bf16.msra.mxu0 %v1871
    %2161 = vmatpush.bf16.msra.mxu0 %v1867
    %2162 = vmatpush.bf16.msra.mxu0 %v1863
    %2163 = vmatpush.bf16.msra.mxu0 %v1859
    %2164 = vmatpush.bf16.msra.mxu0 %v1855
    %2165 = vmatpush.bf16.msra.mxu0 %v1851
    %2166 = vmatmul.bf16.gmra.mxu0 %v1322
    %v2167 = vpop.f32.mrf.mxu0
    %v2168 = vadd.f32 %v1459, %v2167
    %v2169 = vpop.f32.mrf.mxu0
    %2170 = vdwg.mxu0
    %2171 = vmatpush.bf16.msra.mxu0 %v1911
    %2172 = vmatpush.bf16.msra.mxu0 %v1907
    %2173 = vmatpush.bf16.msra.mxu0 %v1903
    %2174 = vmatpush.bf16.msra.mxu0 %v1899
    %2175 = vmatpush.bf16.msra.mxu0 %v1895
    %2176 = vmatpush.bf16.msra.mxu0 %v1891
    %2177 = vmatpush.bf16.msra.mxu0 %v1887
    %2178 = vmatpush.bf16.msra.mxu0 %v1883
    %2179 = vmatmul.bf16.gmra.mxu0 %v1323
    %v2180 = vpop.f32.mrf.mxu0
    %v2181 = vadd.f32 %v2168, %v2180
    %v2182 = vpop.f32.mrf.mxu0
    %2183 = vdwg.mxu0
    %2184 = vmatpush.bf16.msra.mxu0 %v1943
    %2185 = vmatpush.bf16.msra.mxu0 %v1939
    %2186 = vmatpush.bf16.msra.mxu0 %v1935
    %2187 = vmatpush.bf16.msra.mxu0 %v1931
    %2188 = vmatpush.bf16.msra.mxu0 %v1927
    %2189 = vmatpush.bf16.msra.mxu0 %v1923
    %2190 = vmatpush.bf16.msra.mxu0 %v1919
    %2191 = vmatpush.bf16.msra.mxu0 %v1915
    %2192 = vmatmul.bf16.gmra.mxu0 %v1324
    %v2193 = vpop.f32.mrf.mxu0
    %v2194 = vadd.f32 %v2181, %v2193
    %v2195 = vpop.f32.mrf.mxu0
    %2196 = vdwg.mxu0
    %2197 = vmatpush.bf16.msra.mxu0 %v1975
    %2198 = vmatpush.bf16.msra.mxu0 %v1971
    %2199 = vmatpush.bf16.msra.mxu0 %v1967
    %2200 = vmatpush.bf16.msra.mxu0 %v1963
    %2201 = vmatpush.bf16.msra.mxu0 %v1959
    %2202 = vmatpush.bf16.msra.mxu0 %v1955
    %2203 = vmatpush.bf16.msra.mxu0 %v1951
    %2204 = vmatpush.bf16.msra.mxu0 %v1947
    %2205 = vmatmul.bf16.gmra.mxu0 %v1325
    %v2206 = vpop.f32.mrf.mxu0
    %v2207 = vadd.f32 %v2194, %v2206
    %v2208 = vpop.f32.mrf.mxu0
    %2209 = vdwg.mxu0
    %2210 = vmatpush.bf16.msra.mxu0 %v1880
    %2211 = vmatpush.bf16.msra.mxu0 %v1876
    %2212 = vmatpush.bf16.msra.mxu0 %v1872
    %2213 = vmatpush.bf16.msra.mxu0 %v1868
    %2214 = vmatpush.bf16.msra.mxu0 %v1864
    %2215 = vmatpush.bf16.msra.mxu0 %v1860
    %2216 = vmatpush.bf16.msra.mxu0 %v1856
    %2217 = vmatpush.bf16.msra.mxu0 %v1852
    %2218 = vmatmul.bf16.gmra.mxu0 %v1322
    %v2219 = vpop.f32.mrf.mxu0
    %v2220 = vadd.f32 %v1460, %v2219
    %v2221 = vpop.f32.mrf.mxu0
    %2222 = vdwg.mxu0
    %2223 = vmatpush.bf16.msra.mxu0 %v1912
    %2224 = vmatpush.bf16.msra.mxu0 %v1908
    %2225 = vmatpush.bf16.msra.mxu0 %v1904
    %2226 = vmatpush.bf16.msra.mxu0 %v1900
    %2227 = vmatpush.bf16.msra.mxu0 %v1896
    %2228 = vmatpush.bf16.msra.mxu0 %v1892
    %2229 = vmatpush.bf16.msra.mxu0 %v1888
    %2230 = vmatpush.bf16.msra.mxu0 %v1884
    %2231 = vmatmul.bf16.gmra.mxu0 %v1323
    %v2232 = vpop.f32.mrf.mxu0
    %v2233 = vadd.f32 %v2220, %v2232
    %v2234 = vpop.f32.mrf.mxu0
    %2235 = vdwg.mxu0
    %2236 = vmatpush.bf16.msra.mxu0 %v1944
    %2237 = vmatpush.bf16.msra.mxu0 %v1940
    %2238 = vmatpush.bf16.msra.mxu0 %v1936
    %2239 = vmatpush.bf16.msra.mxu0 %v1932
    %2240 = vmatpush.bf16.msra.mxu0 %v1928
    %2241 = vmatpush.bf16.msra.mxu0 %v1924
    %2242 = vmatpush.bf16.msra.mxu0 %v1920
    %2243 = vmatpush.bf16.msra.mxu0 %v1916
    %2244 = vmatmul.bf16.gmra.mxu0 %v1324
    %v2245 = vpop.f32.mrf.mxu0
    %v2246 = vadd.f32 %v2233, %v2245
    %v2247 = vpop.f32.mrf.mxu0
    %2248 = vdwg.mxu0
    %2249 = vmatpush.bf16.msra.mxu0 %v1976
    %2250 = vmatpush.bf16.msra.mxu0 %v1972
    %2251 = vmatpush.bf16.msra.mxu0 %v1968
    %2252 = vmatpush.bf16.msra.mxu0 %v1964
    %2253 = vmatpush.bf16.msra.mxu0 %v1960
    %2254 = vmatpush.bf16.msra.mxu0 %v1956
    %2255 = vmatpush.bf16.msra.mxu0 %v1952
    %2256 = vmatpush.bf16.msra.mxu0 %v1948
    %2257 = vmatmul.bf16.gmra.mxu0 %v1325
    %v2258 = vpop.f32.mrf.mxu0
    %v2259 = vadd.f32 %v2246, %v2258
    %v2260 = vpop.f32.mrf.mxu0
    %2261 = vdwg.mxu0
    %2262 = vmatpush.bf16.msra.mxu0 %v1881
    %2263 = vmatpush.bf16.msra.mxu0 %v1877
    %2264 = vmatpush.bf16.msra.mxu0 %v1873
    %2265 = vmatpush.bf16.msra.mxu0 %v1869
    %2266 = vmatpush.bf16.msra.mxu0 %v1865
    %2267 = vmatpush.bf16.msra.mxu0 %v1861
    %2268 = vmatpush.bf16.msra.mxu0 %v1857
    %2269 = vmatpush.bf16.msra.mxu0 %v1853
    %2270 = vmatmul.bf16.gmra.mxu0 %v1322
    %v2271 = vpop.f32.mrf.mxu0
    %v2272 = vadd.f32 %v1461, %v2271
    %v2273 = vpop.f32.mrf.mxu0
    %2274 = vdwg.mxu0
    %2275 = vmatpush.bf16.msra.mxu0 %v1913
    %2276 = vmatpush.bf16.msra.mxu0 %v1909
    %2277 = vmatpush.bf16.msra.mxu0 %v1905
    %2278 = vmatpush.bf16.msra.mxu0 %v1901
    %2279 = vmatpush.bf16.msra.mxu0 %v1897
    %2280 = vmatpush.bf16.msra.mxu0 %v1893
    %2281 = vmatpush.bf16.msra.mxu0 %v1889
    %2282 = vmatpush.bf16.msra.mxu0 %v1885
    %2283 = vmatmul.bf16.gmra.mxu0 %v1323
    %v2284 = vpop.f32.mrf.mxu0
    %v2285 = vadd.f32 %v2272, %v2284
    %v2286 = vpop.f32.mrf.mxu0
    %2287 = vdwg.mxu0
    %2288 = vmatpush.bf16.msra.mxu0 %v1945
    %2289 = vmatpush.bf16.msra.mxu0 %v1941
    %2290 = vmatpush.bf16.msra.mxu0 %v1937
    %2291 = vmatpush.bf16.msra.mxu0 %v1933
    %2292 = vmatpush.bf16.msra.mxu0 %v1929
    %2293 = vmatpush.bf16.msra.mxu0 %v1925
    %2294 = vmatpush.bf16.msra.mxu0 %v1921
    %2295 = vmatpush.bf16.msra.mxu0 %v1917
    %2296 = vmatmul.bf16.gmra.mxu0 %v1324
    %v2297 = vpop.f32.mrf.mxu0
    %v2298 = vadd.f32 %v2285, %v2297
    %v2299 = vpop.f32.mrf.mxu0
    %2300 = vdwg.mxu0
    %2301 = vmatpush.bf16.msra.mxu0 %v1977
    %2302 = vmatpush.bf16.msra.mxu0 %v1973
    %2303 = vmatpush.bf16.msra.mxu0 %v1969
    %2304 = vmatpush.bf16.msra.mxu0 %v1965
    %2305 = vmatpush.bf16.msra.mxu0 %v1961
    %2306 = vmatpush.bf16.msra.mxu0 %v1957
    %2307 = vmatpush.bf16.msra.mxu0 %v1953
    %2308 = vmatpush.bf16.msra.mxu0 %v1949
    %2309 = vmatmul.bf16.gmra.mxu0 %v1325
    %v2310 = vpop.f32.mrf.mxu0
    %v2311 = vadd.f32 %v2298, %v2310
    %v2312 = vpop.f32.mrf.mxu0
    %2313 = vdwg.mxu0
    %v2314 = vmax.f32 %v2155, 0.0
    %v2315 = vmax.f32 %v2207, 0.0
    %v2316 = vmax.f32 %v2259, 0.0
    %v2317 = vmax.f32 %v2311, 0.0
    %v2318 = vpack.c.bf16 %v2314, %v2314
    %v2319 = vpack.c.bf16 %v2315, %v2315
    %v2320 = vpack.c.bf16 %v2316, %v2316
    %v2321 = vpack.c.bf16 %v2317, %v2317
    %v2322 = vld [vmem:[#allocation6] sm:$0xf]
    %v2323 = vld [vmem:[#allocation6 + $0x4] sm:$0xf]
    %v2324 = vld [vmem:[#allocation6 + $0x8] sm:$0xf]
    %v2325 = vld [vmem:[#allocation6 + $0xc] sm:$0xf]
    %v2326 = vld [vmem:[#allocation6 + $0x10] sm:$0xf]
    %v2327 = vld [vmem:[#allocation6 + $0x14] sm:$0xf]
    %v2328 = vld [vmem:[#allocation6 + $0x18] sm:$0xf]
    %v2329 = vld [vmem:[#allocation6 + $0x1c] sm:$0xf]
    %v2330 = vld [vmem:[#allocation6 + $0x20] sm:$0xf]
    %v2331 = vld [vmem:[#allocation6 + $0x24] sm:$0xf]
    %v2332 = vld [vmem:[#allocation6 + $0x28] sm:$0xf]
    %v2333 = vld [vmem:[#allocation6 + $0x2c] sm:$0xf]
    %v2334 = vld [vmem:[#allocation6 + $0x30] sm:$0xf]
    %v2335 = vld [vmem:[#allocation6 + $0x34] sm:$0xf]
    %v2336 = vld [vmem:[#allocation6 + $0x38] sm:$0xf]
    %v2337 = vld [vmem:[#allocation6 + $0x3c] sm:$0xf]
    %v2338 = vld [vmem:[#allocation6 + $0x40] sm:$0xf]
    %v2339 = vld [vmem:[#allocation6 + $0x44] sm:$0xf]
    %v2340 = vld [vmem:[#allocation6 + $0x48] sm:$0xf]
    %v2341 = vld [vmem:[#allocation6 + $0x4c] sm:$0xf]
    %v2342 = vld [vmem:[#allocation6 + $0x50] sm:$0xf]
    %v2343 = vld [vmem:[#allocation6 + $0x54] sm:$0xf]
    %v2344 = vld [vmem:[#allocation6 + $0x58] sm:$0xf]
    %v2345 = vld [vmem:[#allocation6 + $0x5c] sm:$0xf]
    %v2346 = vld [vmem:[#allocation6 + $0x60] sm:$0xf]
    %v2347 = vld [vmem:[#allocation6 + $0x64] sm:$0xf]
    %v2348 = vld [vmem:[#allocation6 + $0x68] sm:$0xf]
    %v2349 = vld [vmem:[#allocation6 + $0x6c] sm:$0xf]
    %v2350 = vld [vmem:[#allocation6 + $0x70] sm:$0xf]
    %v2351 = vld [vmem:[#allocation6 + $0x74] sm:$0xf]
    %v2352 = vld [vmem:[#allocation6 + $0x78] sm:$0xf]
    %v2353 = vld [vmem:[#allocation6 + $0x7c] sm:$0xf]
    %v2354 = vld [vmem:[#allocation6 + $0x80] sm:$0xf]
    %v2355 = vld [vmem:[#allocation6 + $0x84] sm:$0xf]
    %v2356 = vld [vmem:[#allocation6 + $0x88] sm:$0xf]
    %v2357 = vld [vmem:[#allocation6 + $0x8c] sm:$0xf]
    %v2358 = vld [vmem:[#allocation6 + $0x90] sm:$0xf]
    %v2359 = vld [vmem:[#allocation6 + $0x94] sm:$0xf]
    %v2360 = vld [vmem:[#allocation6 + $0x98] sm:$0xf]
    %v2361 = vld [vmem:[#allocation6 + $0x9c] sm:$0xf]
    %v2362 = vld [vmem:[#allocation6 + $0xa0] sm:$0xf]
    %v2363 = vld [vmem:[#allocation6 + $0xa4] sm:$0xf]
    %v2364 = vld [vmem:[#allocation6 + $0xa8] sm:$0xf]
    %v2365 = vld [vmem:[#allocation6 + $0xac] sm:$0xf]
    %v2366 = vld [vmem:[#allocation6 + $0xb0] sm:$0xf]
    %v2367 = vld [vmem:[#allocation6 + $0xb4] sm:$0xf]
    %v2368 = vld [vmem:[#allocation6 + $0xb8] sm:$0xf]
    %v2369 = vld [vmem:[#allocation6 + $0xbc] sm:$0xf]
    %v2370 = vld [vmem:[#allocation6 + $0xc0] sm:$0xf]
    %v2371 = vld [vmem:[#allocation6 + $0xc4] sm:$0xf]
    %v2372 = vld [vmem:[#allocation6 + $0xc8] sm:$0xf]
    %v2373 = vld [vmem:[#allocation6 + $0xcc] sm:$0xf]
    %v2374 = vld [vmem:[#allocation6 + $0xd0] sm:$0xf]
    %v2375 = vld [vmem:[#allocation6 + $0xd4] sm:$0xf]
    %v2376 = vld [vmem:[#allocation6 + $0xd8] sm:$0xf]
    %v2377 = vld [vmem:[#allocation6 + $0xdc] sm:$0xf]
    %v2378 = vld [vmem:[#allocation6 + $0xe0] sm:$0xf]
    %v2379 = vld [vmem:[#allocation6 + $0xe4] sm:$0xf]
    %v2380 = vld [vmem:[#allocation6 + $0xe8] sm:$0xf]
    %v2381 = vld [vmem:[#allocation6 + $0xec] sm:$0xf]
    %v2382 = vld [vmem:[#allocation6 + $0xf0] sm:$0xf]
    %v2383 = vld [vmem:[#allocation6 + $0xf4] sm:$0xf]
    %v2384 = vld [vmem:[#allocation6 + $0xf8] sm:$0xf]
    %v2385 = vld [vmem:[#allocation6 + $0xfc] sm:$0xf]
    %v2386 = vld [vmem:[%s4 + $0x3] sm:$0x1]
    %v2387 = vperm.slane %v2386, 0
    %v2452 = vunpack.c.l.b16 %v2322
    %v2453 = vunpack.c.l.b16 %v2323
    %v2454 = vunpack.c.l.b16 %v2324
    %v2455 = vunpack.c.l.b16 %v2325
    %v2456 = vunpack.c.l.b16 %v2326
    %v2457 = vunpack.c.l.b16 %v2327
    %v2458 = vunpack.c.l.b16 %v2328
    %v2459 = vunpack.c.l.b16 %v2329
    %v2460 = vunpack.c.l.b16 %v2330
    %v2461 = vunpack.c.l.b16 %v2331
    %v2462 = vunpack.c.l.b16 %v2332
    %v2463 = vunpack.c.l.b16 %v2333
    %v2464 = vunpack.c.l.b16 %v2334
    %v2465 = vunpack.c.l.b16 %v2335
    %v2466 = vunpack.c.l.b16 %v2336
    %v2467 = vunpack.c.l.b16 %v2337
    %v2468 = vunpack.c.l.b16 %v2338
    %v2469 = vunpack.c.l.b16 %v2339
    %v2470 = vunpack.c.l.b16 %v2340
    %v2471 = vunpack.c.l.b16 %v2341
    %v2472 = vunpack.c.l.b16 %v2342
    %v2473 = vunpack.c.l.b16 %v2343
    %v2474 = vunpack.c.l.b16 %v2344
    %v2475 = vunpack.c.l.b16 %v2345
    %v2476 = vunpack.c.l.b16 %v2346
    %v2477 = vunpack.c.l.b16 %v2347
    %v2478 = vunpack.c.l.b16 %v2348
    %v2479 = vunpack.c.l.b16 %v2349
    %v2480 = vunpack.c.l.b16 %v2350
    %v2481 = vunpack.c.l.b16 %v2351
    %v2482 = vunpack.c.l.b16 %v2352
    %v2483 = vunpack.c.l.b16 %v2353
    %v2484 = vunpack.c.l.b16 %v2354
    %v2485 = vunpack.c.l.b16 %v2355
    %v2486 = vunpack.c.l.b16 %v2356
    %v2487 = vunpack.c.l.b16 %v2357
    %v2488 = vunpack.c.l.b16 %v2358
    %v2489 = vunpack.c.l.b16 %v2359
    %v2490 = vunpack.c.l.b16 %v2360
    %v2491 = vunpack.c.l.b16 %v2361
    %v2492 = vunpack.c.l.b16 %v2362
    %v2493 = vunpack.c.l.b16 %v2363
    %v2494 = vunpack.c.l.b16 %v2364
    %v2495 = vunpack.c.l.b16 %v2365
    %v2496 = vunpack.c.l.b16 %v2366
    %v2497 = vunpack.c.l.b16 %v2367
    %v2498 = vunpack.c.l.b16 %v2368
    %v2499 = vunpack.c.l.b16 %v2369
    %v2500 = vunpack.c.l.b16 %v2370
    %v2501 = vunpack.c.l.b16 %v2371
    %v2502 = vunpack.c.l.b16 %v2372
    %v2503 = vunpack.c.l.b16 %v2373
    %v2504 = vunpack.c.l.b16 %v2374
    %v2505 = vunpack.c.l.b16 %v2375
    %v2506 = vunpack.c.l.b16 %v2376
    %v2507 = vunpack.c.l.b16 %v2377
    %v2508 = vunpack.c.l.b16 %v2378
    %v2509 = vunpack.c.l.b16 %v2379
    %v2510 = vunpack.c.l.b16 %v2380
    %v2511 = vunpack.c.l.b16 %v2381
    %v2512 = vunpack.c.l.b16 %v2382
    %v2513 = vunpack.c.l.b16 %v2383
    %v2514 = vunpack.c.l.b16 %v2384
    %v2515 = vunpack.c.l.b16 %v2385
    %v2516 = vpack.c.b16 %v2453, %v2452
    %v2517 = vpack.c.b16 %v2455, %v2454
    %v2518 = vpack.c.b16 %v2457, %v2456
    %v2519 = vpack.c.b16 %v2459, %v2458
    %v2520 = vpack.c.b16 %v2461, %v2460
    %v2521 = vpack.c.b16 %v2463, %v2462
    %v2522 = vpack.c.b16 %v2465, %v2464
    %v2523 = vpack.c.b16 %v2467, %v2466
    %v2524 = vpack.c.b16 %v2469, %v2468
    %v2525 = vpack.c.b16 %v2471, %v2470
    %v2526 = vpack.c.b16 %v2473, %v2472
    %v2527 = vpack.c.b16 %v2475, %v2474
    %v2528 = vpack.c.b16 %v2477, %v2476
    %v2529 = vpack.c.b16 %v2479, %v2478
    %v2530 = vpack.c.b16 %v2481, %v2480
    %v2531 = vpack.c.b16 %v2483, %v2482
    %v2532 = vpack.c.b16 %v2485, %v2484
    %v2533 = vpack.c.b16 %v2487, %v2486
    %v2534 = vpack.c.b16 %v2489, %v2488
    %v2535 = vpack.c.b16 %v2491, %v2490
    %v2536 = vpack.c.b16 %v2493, %v2492
    %v2537 = vpack.c.b16 %v2495, %v2494
    %v2538 = vpack.c.b16 %v2497, %v2496
    %v2539 = vpack.c.b16 %v2499, %v2498
    %v2540 = vpack.c.b16 %v2501, %v2500
    %v2541 = vpack.c.b16 %v2503, %v2502
    %v2542 = vpack.c.b16 %v2505, %v2504
    %v2543 = vpack.c.b16 %v2507, %v2506
    %v2544 = vpack.c.b16 %v2509, %v2508
    %v2545 = vpack.c.b16 %v2511, %v2510
    %v2546 = vpack.c.b16 %v2513, %v2512
    %v2547 = vpack.c.b16 %v2515, %v2514
    %2580 = vmatpush.bf16.msra.mxu0 %v2523
    %2581 = vmatpush.bf16.msra.mxu0 %v2522
    %2582 = vmatpush.bf16.msra.mxu0 %v2521
    %2583 = vmatpush.bf16.msra.mxu0 %v2520
    %2584 = vmatpush.bf16.msra.mxu0 %v2519
    %2585 = vmatpush.bf16.msra.mxu0 %v2518
    %2586 = vmatpush.bf16.msra.mxu0 %v2517
    %2587 = vmatpush.bf16.msra.mxu0 %v2516
    %2588 = vmatmul.bf16.gmra.mxu0 %v2318
    %v2589 = vpop.f32.mrf.mxu0
    %v2590 = vadd.f32 %v2387, %v2589
    %v2591 = vpop.f32.mrf.mxu0
    %2592 = vdwg.mxu0
    %2593 = vmatpush.bf16.msra.mxu0 %v2531
    %2594 = vmatpush.bf16.msra.mxu0 %v2530
    %2595 = vmatpush.bf16.msra.mxu0 %v2529
    %2596 = vmatpush.bf16.msra.mxu0 %v2528
    %2597 = vmatpush.bf16.msra.mxu0 %v2527
    %2598 = vmatpush.bf16.msra.mxu0 %v2526
    %2599 = vmatpush.bf16.msra.mxu0 %v2525
    %2600 = vmatpush.bf16.msra.mxu0 %v2524
    %2601 = vmatmul.bf16.gmra.mxu0 %v2319
    %v2602 = vpop.f32.mrf.mxu0
    %v2603 = vadd.f32 %v2590, %v2602
    %v2604 = vpop.f32.mrf.mxu0
    %2605 = vdwg.mxu0
    %2606 = vmatpush.bf16.msra.mxu0 %v2539
    %2607 = vmatpush.bf16.msra.mxu0 %v2538
    %2608 = vmatpush.bf16.msra.mxu0 %v2537
    %2609 = vmatpush.bf16.msra.mxu0 %v2536
    %2610 = vmatpush.bf16.msra.mxu0 %v2535
    %2611 = vmatpush.bf16.msra.mxu0 %v2534
    %2612 = vmatpush.bf16.msra.mxu0 %v2533
    %2613 = vmatpush.bf16.msra.mxu0 %v2532
    %2614 = vmatmul.bf16.gmra.mxu0 %v2320
    %v2615 = vpop.f32.mrf.mxu0
    %v2616 = vadd.f32 %v2603, %v2615
    %v2617 = vpop.f32.mrf.mxu0
    %2618 = vdwg.mxu0
    %2619 = vmatpush.bf16.msra.mxu0 %v2547
    %2620 = vmatpush.bf16.msra.mxu0 %v2546
    %2621 = vmatpush.bf16.msra.mxu0 %v2545
    %2622 = vmatpush.bf16.msra.mxu0 %v2544
    %2623 = vmatpush.bf16.msra.mxu0 %v2543
    %2624 = vmatpush.bf16.msra.mxu0 %v2542
    %2625 = vmatpush.bf16.msra.mxu0 %v2541
    %2626 = vmatpush.bf16.msra.mxu0 %v2540
    %2627 = vmatmul.bf16.gmra.mxu0 %v2321
    %v2628 = vpop.f32.mrf.mxu0
    %v2629 = vadd.f32 %v2616, %v2628
    %v2630 = vpop.f32.mrf.mxu0
    %2631 = vdwg.mxu0
    %2632 = vst [vmem:[%s5] sm:$0xff] %v2629
    // Predicated region
    $region34: #{classifier_mlp_forward.1} parent=1 // pred_check
      _
    $region35: #{classifier_mlp_forward.1} parent=1 // pred_check_branch
      %2634 = sbr.rel (0) target = $region37
    $region36: #{classifier_mlp_forward.1} parent=1 // pred_region
      _
    $region37: #{classifier_mlp_forward.1} parent=1 // pred_fallthru
      _
    // Predicated region
    $region38: #{classifier_mlp_forward.1} parent=1 // pred_check
      _
    $region39: #{classifier_mlp_forward.1} parent=1 // pred_check_branch
      %2636 = sbr.rel (0) target = $region41
    $region40: #{classifier_mlp_forward.1} parent=1 // pred_region
      _
    $region41: #{classifier_mlp_forward.1} parent=1 // pred_fallthru
      _
    %2637 = vsyncpa [#allocation3], 1
    %2638 = vsyncpa [#allocation5], 1

</llo_original>
